<compile_context>
chip_gen: v6e
topology: v6e:2x2x1
jax: 0.10.0
libtpu: 0.0.40
codegen_flags: <defaults>
</compile_context>

<pallas_src>
import jax
import jax.numpy as jnp
from jax.experimental import pallas as pl
from jax.experimental.pallas import tpu as pltpu

INPUT_SIZE = 2
HIDDEN = 2
NUM_LAYERS = 3   # layer 0 input = INPUT_SIZE = HIDDEN, so all layers share weight shapes


def lstm_kernel(x_ref, wih_ref, whh_ref, b_ref, out_ref):
    """3-layer LSTM forward, fully unrolled, whole sequence in VMEM.

    x_ref   : (T, B, 2)        input sequence
    wih_ref : (L, 2, 4H)       input->gates weights, pre-transposed
    whh_ref : (L, H, 4H)       hidden->gates weights, pre-transposed
    b_ref   : (L, 1, 4H)       combined bias (b_ih + b_hh)
    out_ref : (T, B, H)        output hidden states of the top layer
    """
    T, B, _ = x_ref.shape
    H = HIDDEN
    G = 4 * H

    # Lane mask selecting the g-gate slice [2H, 3H) inside the 4H gate vector.
    lane = jax.lax.broadcasted_iota(jnp.int32, (B, G), 1)
    g_mask = (lane >= 2 * H) & (lane < 3 * H)
    # sigmoid(x) = 0.5 * (1 + tanh(x/2)): scale the sigmoid lanes by 0.5 and do
    # a single tanh over the full gate vector (one EUP push instead of four).
    pre_scale = jnp.where(g_mask, jnp.float32(1.0), jnp.float32(0.5))

    # Load the whole input once (static slices, hoisted out of the recurrence).
    layer_in = [x_ref[t] for t in range(T)]          # each (B, 2)

    for layer in range(NUM_LAYERS):                  # static unroll over layers
        in_dim = INPUT_SIZE if layer == 0 else HIDDEN
        wih_l = wih_ref[layer]                       # (in_dim, 4H)
        whh_l = whh_ref[layer]                       # (H, 4H)
        bias_b = jnp.broadcast_to(b_ref[layer], (B, G))   # hoisted broadcast

        # Pre-slice weight rows once per layer (loop-invariant).
        wih_rows = [wih_l[k:k + 1, :] for k in range(in_dim)]   # each (1, 4H)
        whh_rows = [whh_l[k:k + 1, :] for k in range(H)]        # each (1, 4H)

        h = jnp.zeros((B, H), jnp.float32)           # loop-carried vreg values
        c = jnp.zeros((B, H), jnp.float32)
        outs = []
        for t in range(T):                           # static unroll over time
            xt = layer_in[t]                         # (B, in_dim)

            # Pure-VPU gate pre-activation: 4 broadcast multiply-adds, no MXU.
            gates = bias_b
            for k in range(in_dim):
                gates = gates + xt[:, k:k + 1] * wih_rows[k]
            for k in range(H):
                gates = gates + h[:, k:k + 1] * whh_rows[k]

            t_all = jnp.tanh(gates * pre_scale)                   # one EUP pass
            act = jnp.where(g_mask, t_all, 0.5 * (t_all + 1.0))   # sigmoid fixup

            i_g = act[:, 0:H]
            f_g = act[:, H:2 * H]
            g_g = act[:, 2 * H:3 * H]
            o_g = act[:, 3 * H:4 * H]

            c = f_g * c + i_g * g_g
            h = o_g * jnp.tanh(c)
            outs.append(h)
        layer_in = outs

    # Single bulk store of the top layer's hidden states.
    out_ref[...] = jnp.stack(layer_in, axis=0)


def lstm_forward(x, w_ih, w_hh, b_ih, b_hh):
    """x: (T, B, 2); w_ih/w_hh: (L, 4H, in)/(L, 4H, H); b_*: (L, 4H)."""
    T, B, _ = x.shape
    wih_t = jnp.transpose(w_ih, (0, 2, 1)).astype(jnp.float32)   # (L, in, 4H)
    whh_t = jnp.transpose(w_hh, (0, 2, 1)).astype(jnp.float32)   # (L, H, 4H)
    bias = (b_ih + b_hh)[:, None, :].astype(jnp.float32)         # (L, 1, 4H)

    return pl.pallas_call(
        lstm_kernel,
        out_shape=jax.ShapeDtypeStruct((T, B, HIDDEN), jnp.float32),
        in_specs=[pl.BlockSpec(memory_space=pltpu.MemorySpace.VMEM)] * 4,
        out_specs=pl.BlockSpec(memory_space=pltpu.MemorySpace.VMEM),
    )(x, wih_t, whh_t, bias)
    # TODO(synk): if T ever grows large, add a time-chunked grid with h/c
    # carried in scratch across grid steps (size chunk against 64 MiB on v7x).


def lstm_ref(x, w_ih, w_hh, b_ih, b_hh):
    """Pure-JAX reference matching torch.nn.LSTM(2, 2, 3) forward."""
    T, B, _ = x.shape
    inp = x
    for l in range(NUM_LAYERS):
        h = jnp.zeros((B, HIDDEN), jnp.float32)
        c = jnp.zeros((B, HIDDEN), jnp.float32)
        outs = []
        for t in range(T):
            gates = inp[t] @ w_ih[l].T + h @ w_hh[l].T + b_ih[l] + b_hh[l]
            i_g = jax.nn.sigmoid(gates[:, 0:HIDDEN])
            f_g = jax.nn.sigmoid(gates[:, HIDDEN:2 * HIDDEN])
            g_g = jnp.tanh(gates[:, 2 * HIDDEN:3 * HIDDEN])
            o_g = jax.nn.sigmoid(gates[:, 3 * HIDDEN:4 * HIDDEN])
            c = f_g * c + i_g * g_g
            h = o_g * jnp.tanh(c)
            outs.append(h)
        inp = jnp.stack(outs, axis=0)
    return inp


if __name__ == "__main__":
    T, B = 8, 2
    key = jax.random.PRNGKey(0)
    k_x, k_wih, k_whh, k_bih, k_bhh = jax.random.split(key, 5)

    # deterministic init mimicking PyTorch's U(-1/sqrt(H), 1/sqrt(H))
    k = 1.0 / jnp.sqrt(jnp.float32(HIDDEN))
    x = jax.random.normal(k_x, (T, B, INPUT_SIZE), dtype=jnp.float32)
    w_ih = jax.random.uniform(k_wih, (NUM_LAYERS, 4 * HIDDEN, INPUT_SIZE),
                              minval=-k, maxval=k, dtype=jnp.float32)
    w_hh = jax.random.uniform(k_whh, (NUM_LAYERS, 4 * HIDDEN, HIDDEN),
                              minval=-k, maxval=k, dtype=jnp.float32)
    b_ih = jax.random.uniform(k_bih, (NUM_LAYERS, 4 * HIDDEN),
                              minval=-k, maxval=k, dtype=jnp.float32)
    b_hh = jax.random.uniform(k_bhh, (NUM_LAYERS, 4 * HIDDEN),
                              minval=-k, maxval=k, dtype=jnp.float32)

    out = lstm_forward(x, w_ih, w_hh, b_ih, b_hh)
    out = jax.block_until_ready(out)

    ref = lstm_ref(x, w_ih, w_hh, b_ih, b_hh)
    assert out.shape == (T, B, HIDDEN)
    assert jnp.allclose(out, ref, atol=1e-5, rtol=1e-5), "mismatch vs reference"

    print("KERNEL_OK")
</pallas_src>

<mosaic_0001>
module attributes {stable_mosaic.version = 11 : i64} {
  func.func @lstm_kernel(%arg0: memref<8x2x2xf32, #tpu.memory_space<vmem>>, %arg1: memref<3x2x8xf32, #tpu.memory_space<vmem>>, %arg2: memref<3x2x8xf32, #tpu.memory_space<vmem>>, %arg3: memref<3x1x8xf32, #tpu.memory_space<vmem>>, %arg4: memref<8x2x2xf32, #tpu.memory_space<vmem>>) attributes {dimension_semantics = [], scalar_prefetch = 0 : i64, scratch_operands = 0 : i64, tpu.core_type = #tpu.core_type<tc>} {
    %0 = tpu.iota {dimensions = array<i32: 1>} : vector<2x8xi32>
    %c4_i32 = arith.constant 4 : i32
    %1 = vector.broadcast %c4_i32 : i32 to vector<2x8xi32>
    %2 = arith.cmpi sge, %0, %1 : vector<2x8xi32>
    %c6_i32 = arith.constant 6 : i32
    %3 = vector.broadcast %c6_i32 : i32 to vector<2x8xi32>
    %4 = arith.cmpi slt, %0, %3 : vector<2x8xi32>
    %5 = arith.andi %2, %4 : vector<2x8xi1>
    %cst = arith.constant 1.000000e+00 : f32
    %cst_0 = arith.constant 5.000000e-01 : f32
    %6 = vector.broadcast %cst : f32 to vector<2x8xf32>
    %7 = vector.broadcast %cst_0 : f32 to vector<2x8xf32>
    %8 = arith.select %5, %6, %7 : vector<2x8xi1>, vector<2x8xf32>
    %c0 = arith.constant 0 : index
    %c0_1 = arith.constant 0 : index
    %c0_2 = arith.constant 0 : index
    %9 = vector.load %arg0[%c0, %c0_1, %c0_2] : memref<8x2x2xf32, #tpu.memory_space<vmem>>, vector<1x2x2xf32>
    %10 = vector.shape_cast %9 : vector<1x2x2xf32> to vector<2x2xf32>
    %c1 = arith.constant 1 : index
    %c0_3 = arith.constant 0 : index
    %c0_4 = arith.constant 0 : index
    %11 = vector.load %arg0[%c1, %c0_3, %c0_4] : memref<8x2x2xf32, #tpu.memory_space<vmem>>, vector<1x2x2xf32>
    %12 = vector.shape_cast %11 : vector<1x2x2xf32> to vector<2x2xf32>
    %c2 = arith.constant 2 : index
    %c0_5 = arith.constant 0 : index
    %c0_6 = arith.constant 0 : index
    %13 = vector.load %arg0[%c2, %c0_5, %c0_6] : memref<8x2x2xf32, #tpu.memory_space<vmem>>, vector<1x2x2xf32>
    %14 = vector.shape_cast %13 : vector<1x2x2xf32> to vector<2x2xf32>
    %c3 = arith.constant 3 : index
    %c0_7 = arith.constant 0 : index
    %c0_8 = arith.constant 0 : index
    %15 = vector.load %arg0[%c3, %c0_7, %c0_8] : memref<8x2x2xf32, #tpu.memory_space<vmem>>, vector<1x2x2xf32>
    %16 = vector.shape_cast %15 : vector<1x2x2xf32> to vector<2x2xf32>
    %c4 = arith.constant 4 : index
    %c0_9 = arith.constant 0 : index
    %c0_10 = arith.constant 0 : index
    %17 = vector.load %arg0[%c4, %c0_9, %c0_10] : memref<8x2x2xf32, #tpu.memory_space<vmem>>, vector<1x2x2xf32>
    %18 = vector.shape_cast %17 : vector<1x2x2xf32> to vector<2x2xf32>
    %c5 = arith.constant 5 : index
    %c0_11 = arith.constant 0 : index
    %c0_12 = arith.constant 0 : index
    %19 = vector.load %arg0[%c5, %c0_11, %c0_12] : memref<8x2x2xf32, #tpu.memory_space<vmem>>, vector<1x2x2xf32>
    %20 = vector.shape_cast %19 : vector<1x2x2xf32> to vector<2x2xf32>
    %c6 = arith.constant 6 : index
    %c0_13 = arith.constant 0 : index
    %c0_14 = arith.constant 0 : index
    %21 = vector.load %arg0[%c6, %c0_13, %c0_14] : memref<8x2x2xf32, #tpu.memory_space<vmem>>, vector<1x2x2xf32>
    %22 = vector.shape_cast %21 : vector<1x2x2xf32> to vector<2x2xf32>
    %c7 = arith.constant 7 : index
    %c0_15 = arith.constant 0 : index
    %c0_16 = arith.constant 0 : index
    %23 = vector.load %arg0[%c7, %c0_15, %c0_16] : memref<8x2x2xf32, #tpu.memory_space<vmem>>, vector<1x2x2xf32>
    %24 = vector.shape_cast %23 : vector<1x2x2xf32> to vector<2x2xf32>
    %c0_17 = arith.constant 0 : index
    %c0_18 = arith.constant 0 : index
    %c0_19 = arith.constant 0 : index
    %25 = vector.load %arg1[%c0_17, %c0_18, %c0_19] : memref<3x2x8xf32, #tpu.memory_space<vmem>>, vector<1x2x8xf32>
    %26 = vector.shape_cast %25 : vector<1x2x8xf32> to vector<2x8xf32>
    %c0_20 = arith.constant 0 : index
    %c0_21 = arith.constant 0 : index
    %c0_22 = arith.constant 0 : index
    %27 = vector.load %arg2[%c0_20, %c0_21, %c0_22] : memref<3x2x8xf32, #tpu.memory_space<vmem>>, vector<1x2x8xf32>
    %28 = vector.shape_cast %27 : vector<1x2x8xf32> to vector<2x8xf32>
    %c0_23 = arith.constant 0 : index
    %c0_24 = arith.constant 0 : index
    %c0_25 = arith.constant 0 : index
    %29 = vector.load %arg3[%c0_23, %c0_24, %c0_25] : memref<3x1x8xf32, #tpu.memory_space<vmem>>, vector<1x1x8xf32>
    %30 = vector.shape_cast %29 : vector<1x1x8xf32> to vector<1x8xf32>
    %31 = vector.shape_cast %30 : vector<1x8xf32> to vector<1x8xf32>
    %32 = vector.broadcast %31 : vector<1x8xf32> to vector<2x8xf32>
    %33 = vector.extract_strided_slice %26 {offsets = [0, 0], sizes = [1, 8], strides = [1, 1]} : vector<2x8xf32> to vector<1x8xf32>
    %34 = vector.extract_strided_slice %26 {offsets = [1, 0], sizes = [1, 8], strides = [1, 1]} : vector<2x8xf32> to vector<1x8xf32>
    %35 = vector.extract_strided_slice %28 {offsets = [0, 0], sizes = [1, 8], strides = [1, 1]} : vector<2x8xf32> to vector<1x8xf32>
    %36 = vector.extract_strided_slice %28 {offsets = [1, 0], sizes = [1, 8], strides = [1, 1]} : vector<2x8xf32> to vector<1x8xf32>
    %cst_26 = arith.constant 0.000000e+00 : f32
    %37 = vector.broadcast %cst_26 : f32 to vector<2x2xf32>
    %cst_27 = arith.constant 0.000000e+00 : f32
    %38 = vector.broadcast %cst_27 : f32 to vector<2x2xf32>
    %39 = vector.extract_strided_slice %10 {offsets = [0, 0], sizes = [2, 1], strides = [1, 1]} : vector<2x2xf32> to vector<2x1xf32>
    %40 = vector.broadcast %39 : vector<2x1xf32> to vector<2x8xf32>
    %41 = vector.broadcast %33 : vector<1x8xf32> to vector<2x8xf32>
    %42 = arith.mulf %40, %41 : vector<2x8xf32>
    %43 = arith.addf %32, %42 : vector<2x8xf32>
    %44 = vector.extract_strided_slice %10 {offsets = [0, 1], sizes = [2, 1], strides = [1, 1]} : vector<2x2xf32> to vector<2x1xf32>
    %45 = vector.broadcast %44 : vector<2x1xf32> to vector<2x8xf32>
    %46 = vector.broadcast %34 : vector<1x8xf32> to vector<2x8xf32>
    %47 = arith.mulf %45, %46 : vector<2x8xf32>
    %48 = arith.addf %43, %47 : vector<2x8xf32>
    %49 = vector.extract_strided_slice %37 {offsets = [0, 0], sizes = [2, 1], strides = [1, 1]} : vector<2x2xf32> to vector<2x1xf32>
    %50 = vector.broadcast %49 : vector<2x1xf32> to vector<2x8xf32>
    %51 = vector.broadcast %35 : vector<1x8xf32> to vector<2x8xf32>
    %52 = arith.mulf %50, %51 : vector<2x8xf32>
    %53 = arith.addf %48, %52 : vector<2x8xf32>
    %54 = vector.extract_strided_slice %37 {offsets = [0, 1], sizes = [2, 1], strides = [1, 1]} : vector<2x2xf32> to vector<2x1xf32>
    %55 = vector.broadcast %54 : vector<2x1xf32> to vector<2x8xf32>
    %56 = vector.broadcast %36 : vector<1x8xf32> to vector<2x8xf32>
    %57 = arith.mulf %55, %56 : vector<2x8xf32>
    %58 = arith.addf %53, %57 : vector<2x8xf32>
    %59 = arith.mulf %58, %8 : vector<2x8xf32>
    %60 = math.tanh %59 : vector<2x8xf32>
    %cst_28 = arith.constant 1.000000e+00 : f32
    %61 = vector.broadcast %cst_28 : f32 to vector<2x8xf32>
    %62 = arith.addf %60, %61 : vector<2x8xf32>
    %cst_29 = arith.constant 5.000000e-01 : f32
    %63 = vector.broadcast %cst_29 : f32 to vector<2x8xf32>
    %64 = arith.mulf %63, %62 : vector<2x8xf32>
    %65 = arith.select %5, %60, %64 : vector<2x8xi1>, vector<2x8xf32>
    %66 = vector.extract_strided_slice %65 {offsets = [0, 0], sizes = [2, 2], strides = [1, 1]} : vector<2x8xf32> to vector<2x2xf32>
    %67 = vector.extract_strided_slice %65 {offsets = [0, 2], sizes = [2, 2], strides = [1, 1]} : vector<2x8xf32> to vector<2x2xf32>
    %68 = vector.extract_strided_slice %65 {offsets = [0, 4], sizes = [2, 2], strides = [1, 1]} : vector<2x8xf32> to vector<2x2xf32>
    %69 = vector.extract_strided_slice %65 {offsets = [0, 6], sizes = [2, 2], strides = [1, 1]} : vector<2x8xf32> to vector<2x2xf32>
    %70 = arith.mulf %67, %38 : vector<2x2xf32>
    %71 = arith.mulf %66, %68 : vector<2x2xf32>
    %72 = arith.addf %70, %71 : vector<2x2xf32>
    %73 = math.tanh %72 : vector<2x2xf32>
    %74 = arith.mulf %69, %73 : vector<2x2xf32>
    %75 = vector.extract_strided_slice %12 {offsets = [0, 0], sizes = [2, 1], strides = [1, 1]} : vector<2x2xf32> to vector<2x1xf32>
    %76 = vector.broadcast %75 : vector<2x1xf32> to vector<2x8xf32>
    %77 = vector.broadcast %33 : vector<1x8xf32> to vector<2x8xf32>
    %78 = arith.mulf %76, %77 : vector<2x8xf32>
    %79 = arith.addf %32, %78 : vector<2x8xf32>
    %80 = vector.extract_strided_slice %12 {offsets = [0, 1], sizes = [2, 1], strides = [1, 1]} : vector<2x2xf32> to vector<2x1xf32>
    %81 = vector.broadcast %80 : vector<2x1xf32> to vector<2x8xf32>
    %82 = vector.broadcast %34 : vector<1x8xf32> to vector<2x8xf32>
    %83 = arith.mulf %81, %82 : vector<2x8xf32>
    %84 = arith.addf %79, %83 : vector<2x8xf32>
    %85 = vector.extract_strided_slice %74 {offsets = [0, 0], sizes = [2, 1], strides = [1, 1]} : vector<2x2xf32> to vector<2x1xf32>
    %86 = vector.broadcast %85 : vector<2x1xf32> to vector<2x8xf32>
    %87 = vector.broadcast %35 : vector<1x8xf32> to vector<2x8xf32>
    %88 = arith.mulf %86, %87 : vector<2x8xf32>
    %89 = arith.addf %84, %88 : vector<2x8xf32>
    %90 = vector.extract_strided_slice %74 {offsets = [0, 1], sizes = [2, 1], strides = [1, 1]} : vector<2x2xf32> to vector<2x1xf32>
    %91 = vector.broadcast %90 : vector<2x1xf32> to vector<2x8xf32>
    %92 = vector.broadcast %36 : vector<1x8xf32> to vector<2x8xf32>
    %93 = arith.mulf %91, %92 : vector<2x8xf32>
    %94 = arith.addf %89, %93 : vector<2x8xf32>
    %95 = arith.mulf %94, %8 : vector<2x8xf32>
    %96 = math.tanh %95 : vector<2x8xf32>
    %cst_30 = arith.constant 1.000000e+00 : f32
    %97 = vector.broadcast %cst_30 : f32 to vector<2x8xf32>
    %98 = arith.addf %96, %97 : vector<2x8xf32>
    %cst_31 = arith.constant 5.000000e-01 : f32
    %99 = vector.broadcast %cst_31 : f32 to vector<2x8xf32>
    %100 = arith.mulf %99, %98 : vector<2x8xf32>
    %101 = arith.select %5, %96, %100 : vector<2x8xi1>, vector<2x8xf32>
    %102 = vector.extract_strided_slice %101 {offsets = [0, 0], sizes = [2, 2], strides = [1, 1]} : vector<2x8xf32> to vector<2x2xf32>
    %103 = vector.extract_strided_slice %101 {offsets = [0, 2], sizes = [2, 2], strides = [1, 1]} : vector<2x8xf32> to vector<2x2xf32>
    %104 = vector.extract_strided_slice %101 {offsets = [0, 4], sizes = [2, 2], strides = [1, 1]} : vector<2x8xf32> to vector<2x2xf32>
    %105 = vector.extract_strided_slice %101 {offsets = [0, 6], sizes = [2, 2], strides = [1, 1]} : vector<2x8xf32> to vector<2x2xf32>
    %106 = arith.mulf %103, %72 : vector<2x2xf32>
    %107 = arith.mulf %102, %104 : vector<2x2xf32>
    %108 = arith.addf %106, %107 : vector<2x2xf32>
    %109 = math.tanh %108 : vector<2x2xf32>
    %110 = arith.mulf %105, %109 : vector<2x2xf32>
    %111 = vector.extract_strided_slice %14 {offsets = [0, 0], sizes = [2, 1], strides = [1, 1]} : vector<2x2xf32> to vector<2x1xf32>
    %112 = vector.broadcast %111 : vector<2x1xf32> to vector<2x8xf32>
    %113 = vector.broadcast %33 : vector<1x8xf32> to vector<2x8xf32>
    %114 = arith.mulf %112, %113 : vector<2x8xf32>
    %115 = arith.addf %32, %114 : vector<2x8xf32>
    %116 = vector.extract_strided_slice %14 {offsets = [0, 1], sizes = [2, 1], strides = [1, 1]} : vector<2x2xf32> to vector<2x1xf32>
    %117 = vector.broadcast %116 : vector<2x1xf32> to vector<2x8xf32>
    %118 = vector.broadcast %34 : vector<1x8xf32> to vector<2x8xf32>
    %119 = arith.mulf %117, %118 : vector<2x8xf32>
    %120 = arith.addf %115, %119 : vector<2x8xf32>
    %121 = vector.extract_strided_slice %110 {offsets = [0, 0], sizes = [2, 1], strides = [1, 1]} : vector<2x2xf32> to vector<2x1xf32>
    %122 = vector.broadcast %121 : vector<2x1xf32> to vector<2x8xf32>
    %123 = vector.broadcast %35 : vector<1x8xf32> to vector<2x8xf32>
    %124 = arith.mulf %122, %123 : vector<2x8xf32>
    %125 = arith.addf %120, %124 : vector<2x8xf32>
    %126 = vector.extract_strided_slice %110 {offsets = [0, 1], sizes = [2, 1], strides = [1, 1]} : vector<2x2xf32> to vector<2x1xf32>
    %127 = vector.broadcast %126 : vector<2x1xf32> to vector<2x8xf32>
    %128 = vector.broadcast %36 : vector<1x8xf32> to vector<2x8xf32>
    %129 = arith.mulf %127, %128 : vector<2x8xf32>
    %130 = arith.addf %125, %129 : vector<2x8xf32>
    %131 = arith.mulf %130, %8 : vector<2x8xf32>
    %132 = math.tanh %131 : vector<2x8xf32>
    %cst_32 = arith.constant 1.000000e+00 : f32
    %133 = vector.broadcast %cst_32 : f32 to vector<2x8xf32>
    %134 = arith.addf %132, %133 : vector<2x8xf32>
    %cst_33 = arith.constant 5.000000e-01 : f32
    %135 = vector.broadcast %cst_33 : f32 to vector<2x8xf32>
    %136 = arith.mulf %135, %134 : vector<2x8xf32>
    %137 = arith.select %5, %132, %136 : vector<2x8xi1>, vector<2x8xf32>
    %138 = vector.extract_strided_slice %137 {offsets = [0, 0], sizes = [2, 2], strides = [1, 1]} : vector<2x8xf32> to vector<2x2xf32>
    %139 = vector.extract_strided_slice %137 {offsets = [0, 2], sizes = [2, 2], strides = [1, 1]} : vector<2x8xf32> to vector<2x2xf32>
    %140 = vector.extract_strided_slice %137 {offsets = [0, 4], sizes = [2, 2], strides = [1, 1]} : vector<2x8xf32> to vector<2x2xf32>
    %141 = vector.extract_strided_slice %137 {offsets = [0, 6], sizes = [2, 2], strides = [1, 1]} : vector<2x8xf32> to vector<2x2xf32>
    %142 = arith.mulf %139, %108 : vector<2x2xf32>
    %143 = arith.mulf %138, %140 : vector<2x2xf32>
    %144 = arith.addf %142, %143 : vector<2x2xf32>
    %145 = math.tanh %144 : vector<2x2xf32>
    %146 = arith.mulf %141, %145 : vector<2x2xf32>
    %147 = vector.extract_strided_slice %16 {offsets = [0, 0], sizes = [2, 1], strides = [1, 1]} : vector<2x2xf32> to vector<2x1xf32>
    %148 = vector.broadcast %147 : vector<2x1xf32> to vector<2x8xf32>
    %149 = vector.broadcast %33 : vector<1x8xf32> to vector<2x8xf32>
    %150 = arith.mulf %148, %149 : vector<2x8xf32>
    %151 = arith.addf %32, %150 : vector<2x8xf32>
    %152 = vector.extract_strided_slice %16 {offsets = [0, 1], sizes = [2, 1], strides = [1, 1]} : vector<2x2xf32> to vector<2x1xf32>
    %153 = vector.broadcast %152 : vector<2x1xf32> to vector<2x8xf32>
    %154 = vector.broadcast %34 : vector<1x8xf32> to vector<2x8xf32>
    %155 = arith.mulf %153, %154 : vector<2x8xf32>
    %156 = arith.addf %151, %155 : vector<2x8xf32>
    %157 = vector.extract_strided_slice %146 {offsets = [0, 0], sizes = [2, 1], strides = [1, 1]} : vector<2x2xf32> to vector<2x1xf32>
    %158 = vector.broadcast %157 : vector<2x1xf32> to vector<2x8xf32>
    %159 = vector.broadcast %35 : vector<1x8xf32> to vector<2x8xf32>
    %160 = arith.mulf %158, %159 : vector<2x8xf32>
    %161 = arith.addf %156, %160 : vector<2x8xf32>
    %162 = vector.extract_strided_slice %146 {offsets = [0, 1], sizes = [2, 1], strides = [1, 1]} : vector<2x2xf32> to vector<2x1xf32>
    %163 = vector.broadcast %162 : vector<2x1xf32> to vector<2x8xf32>
    %164 = vector.broadcast %36 : vector<1x8xf32> to vector<2x8xf32>
    %165 = arith.mulf %163, %164 : vector<2x8xf32>
    %166 = arith.addf %161, %165 : vector<2x8xf32>
    %167 = arith.mulf %166, %8 : vector<2x8xf32>
    %168 = math.tanh %167 : vector<2x8xf32>
    %cst_34 = arith.constant 1.000000e+00 : f32
    %169 = vector.broadcast %cst_34 : f32 to vector<2x8xf32>
    %170 = arith.addf %168, %169 : vector<2x8xf32>
    %cst_35 = arith.constant 5.000000e-01 : f32
    %171 = vector.broadcast %cst_35 : f32 to vector<2x8xf32>
    %172 = arith.mulf %171, %170 : vector<2x8xf32>
    %173 = arith.select %5, %168, %172 : vector<2x8xi1>, vector<2x8xf32>
    %174 = vector.extract_strided_slice %173 {offsets = [0, 0], sizes = [2, 2], strides = [1, 1]} : vector<2x8xf32> to vector<2x2xf32>
    %175 = vector.extract_strided_slice %173 {offsets = [0, 2], sizes = [2, 2], strides = [1, 1]} : vector<2x8xf32> to vector<2x2xf32>
    %176 = vector.extract_strided_slice %173 {offsets = [0, 4], sizes = [2, 2], strides = [1, 1]} : vector<2x8xf32> to vector<2x2xf32>
    %177 = vector.extract_strided_slice %173 {offsets = [0, 6], sizes = [2, 2], strides = [1, 1]} : vector<2x8xf32> to vector<2x2xf32>
    %178 = arith.mulf %175, %144 : vector<2x2xf32>
    %179 = arith.mulf %174, %176 : vector<2x2xf32>
    %180 = arith.addf %178, %179 : vector<2x2xf32>
    %181 = math.tanh %180 : vector<2x2xf32>
    %182 = arith.mulf %177, %181 : vector<2x2xf32>
    %183 = vector.extract_strided_slice %18 {offsets = [0, 0], sizes = [2, 1], strides = [1, 1]} : vector<2x2xf32> to vector<2x1xf32>
    %184 = vector.broadcast %183 : vector<2x1xf32> to vector<2x8xf32>
    %185 = vector.broadcast %33 : vector<1x8xf32> to vector<2x8xf32>
    %186 = arith.mulf %184, %185 : vector<2x8xf32>
    %187 = arith.addf %32, %186 : vector<2x8xf32>
    %188 = vector.extract_strided_slice %18 {offsets = [0, 1], sizes = [2, 1], strides = [1, 1]} : vector<2x2xf32> to vector<2x1xf32>
    %189 = vector.broadcast %188 : vector<2x1xf32> to vector<2x8xf32>
    %190 = vector.broadcast %34 : vector<1x8xf32> to vector<2x8xf32>
    %191 = arith.mulf %189, %190 : vector<2x8xf32>
    %192 = arith.addf %187, %191 : vector<2x8xf32>
    %193 = vector.extract_strided_slice %182 {offsets = [0, 0], sizes = [2, 1], strides = [1, 1]} : vector<2x2xf32> to vector<2x1xf32>
    %194 = vector.broadcast %193 : vector<2x1xf32> to vector<2x8xf32>
    %195 = vector.broadcast %35 : vector<1x8xf32> to vector<2x8xf32>
    %196 = arith.mulf %194, %195 : vector<2x8xf32>
    %197 = arith.addf %192, %196 : vector<2x8xf32>
    %198 = vector.extract_strided_slice %182 {offsets = [0, 1], sizes = [2, 1], strides = [1, 1]} : vector<2x2xf32> to vector<2x1xf32>
    %199 = vector.broadcast %198 : vector<2x1xf32> to vector<2x8xf32>
    %200 = vector.broadcast %36 : vector<1x8xf32> to vector<2x8xf32>
    %201 = arith.mulf %199, %200 : vector<2x8xf32>
    %202 = arith.addf %197, %201 : vector<2x8xf32>
    %203 = arith.mulf %202, %8 : vector<2x8xf32>
    %204 = math.tanh %203 : vector<2x8xf32>
    %cst_36 = arith.constant 1.000000e+00 : f32
    %205 = vector.broadcast %cst_36 : f32 to vector<2x8xf32>
    %206 = arith.addf %204, %205 : vector<2x8xf32>
    %cst_37 = arith.constant 5.000000e-01 : f32
    %207 = vector.broadcast %cst_37 : f32 to vector<2x8xf32>
    %208 = arith.mulf %207, %206 : vector<2x8xf32>
    %209 = arith.select %5, %204, %208 : vector<2x8xi1>, vector<2x8xf32>
    %210 = vector.extract_strided_slice %209 {offsets = [0, 0], sizes = [2, 2], strides = [1, 1]} : vector<2x8xf32> to vector<2x2xf32>
    %211 = vector.extract_strided_slice %209 {offsets = [0, 2], sizes = [2, 2], strides = [1, 1]} : vector<2x8xf32> to vector<2x2xf32>
    %212 = vector.extract_strided_slice %209 {offsets = [0, 4], sizes = [2, 2], strides = [1, 1]} : vector<2x8xf32> to vector<2x2xf32>
    %213 = vector.extract_strided_slice %209 {offsets = [0, 6], sizes = [2, 2], strides = [1, 1]} : vector<2x8xf32> to vector<2x2xf32>
    %214 = arith.mulf %211, %180 : vector<2x2xf32>
    %215 = arith.mulf %210, %212 : vector<2x2xf32>
    %216 = arith.addf %214, %215 : vector<2x2xf32>
    %217 = math.tanh %216 : vector<2x2xf32>
    %218 = arith.mulf %213, %217 : vector<2x2xf32>
    %219 = vector.extract_strided_slice %20 {offsets = [0, 0], sizes = [2, 1], strides = [1, 1]} : vector<2x2xf32> to vector<2x1xf32>
    %220 = vector.broadcast %219 : vector<2x1xf32> to vector<2x8xf32>
    %221 = vector.broadcast %33 : vector<1x8xf32> to vector<2x8xf32>
    %222 = arith.mulf %220, %221 : vector<2x8xf32>
    %223 = arith.addf %32, %222 : vector<2x8xf32>
    %224 = vector.extract_strided_slice %20 {offsets = [0, 1], sizes = [2, 1], strides = [1, 1]} : vector<2x2xf32> to vector<2x1xf32>
    %225 = vector.broadcast %224 : vector<2x1xf32> to vector<2x8xf32>
    %226 = vector.broadcast %34 : vector<1x8xf32> to vector<2x8xf32>
    %227 = arith.mulf %225, %226 : vector<2x8xf32>
    %228 = arith.addf %223, %227 : vector<2x8xf32>
    %229 = vector.extract_strided_slice %218 {offsets = [0, 0], sizes = [2, 1], strides = [1, 1]} : vector<2x2xf32> to vector<2x1xf32>
    %230 = vector.broadcast %229 : vector<2x1xf32> to vector<2x8xf32>
    %231 = vector.broadcast %35 : vector<1x8xf32> to vector<2x8xf32>
    %232 = arith.mulf %230, %231 : vector<2x8xf32>
    %233 = arith.addf %228, %232 : vector<2x8xf32>
    %234 = vector.extract_strided_slice %218 {offsets = [0, 1], sizes = [2, 1], strides = [1, 1]} : vector<2x2xf32> to vector<2x1xf32>
    %235 = vector.broadcast %234 : vector<2x1xf32> to vector<2x8xf32>
    %236 = vector.broadcast %36 : vector<1x8xf32> to vector<2x8xf32>
    %237 = arith.mulf %235, %236 : vector<2x8xf32>
    %238 = arith.addf %233, %237 : vector<2x8xf32>
    %239 = arith.mulf %238, %8 : vector<2x8xf32>
    %240 = math.tanh %239 : vector<2x8xf32>
    %cst_38 = arith.constant 1.000000e+00 : f32
    %241 = vector.broadcast %cst_38 : f32 to vector<2x8xf32>
    %242 = arith.addf %240, %241 : vector<2x8xf32>
    %cst_39 = arith.constant 5.000000e-01 : f32
    %243 = vector.broadcast %cst_39 : f32 to vector<2x8xf32>
    %244 = arith.mulf %243, %242 : vector<2x8xf32>
    %245 = arith.select %5, %240, %244 : vector<2x8xi1>, vector<2x8xf32>
    %246 = vector.extract_strided_slice %245 {offsets = [0, 0], sizes = [2, 2], strides = [1, 1]} : vector<2x8xf32> to vector<2x2xf32>
    %247 = vector.extract_strided_slice %245 {offsets = [0, 2], sizes = [2, 2], strides = [1, 1]} : vector<2x8xf32> to vector<2x2xf32>
    %248 = vector.extract_strided_slice %245 {offsets = [0, 4], sizes = [2, 2], strides = [1, 1]} : vector<2x8xf32> to vector<2x2xf32>
    %249 = vector.extract_strided_slice %245 {offsets = [0, 6], sizes = [2, 2], strides = [1, 1]} : vector<2x8xf32> to vector<2x2xf32>
    %250 = arith.mulf %247, %216 : vector<2x2xf32>
    %251 = arith.mulf %246, %248 : vector<2x2xf32>
    %252 = arith.addf %250, %251 : vector<2x2xf32>
    %253 = math.tanh %252 : vector<2x2xf32>
    %254 = arith.mulf %249, %253 : vector<2x2xf32>
    %255 = vector.extract_strided_slice %22 {offsets = [0, 0], sizes = [2, 1], strides = [1, 1]} : vector<2x2xf32> to vector<2x1xf32>
    %256 = vector.broadcast %255 : vector<2x1xf32> to vector<2x8xf32>
    %257 = vector.broadcast %33 : vector<1x8xf32> to vector<2x8xf32>
    %258 = arith.mulf %256, %257 : vector<2x8xf32>
    %259 = arith.addf %32, %258 : vector<2x8xf32>
    %260 = vector.extract_strided_slice %22 {offsets = [0, 1], sizes = [2, 1], strides = [1, 1]} : vector<2x2xf32> to vector<2x1xf32>
    %261 = vector.broadcast %260 : vector<2x1xf32> to vector<2x8xf32>
    %262 = vector.broadcast %34 : vector<1x8xf32> to vector<2x8xf32>
    %263 = arith.mulf %261, %262 : vector<2x8xf32>
    %264 = arith.addf %259, %263 : vector<2x8xf32>
    %265 = vector.extract_strided_slice %254 {offsets = [0, 0], sizes = [2, 1], strides = [1, 1]} : vector<2x2xf32> to vector<2x1xf32>
    %266 = vector.broadcast %265 : vector<2x1xf32> to vector<2x8xf32>
    %267 = vector.broadcast %35 : vector<1x8xf32> to vector<2x8xf32>
    %268 = arith.mulf %266, %267 : vector<2x8xf32>
    %269 = arith.addf %264, %268 : vector<2x8xf32>
    %270 = vector.extract_strided_slice %254 {offsets = [0, 1], sizes = [2, 1], strides = [1, 1]} : vector<2x2xf32> to vector<2x1xf32>
    %271 = vector.broadcast %270 : vector<2x1xf32> to vector<2x8xf32>
    %272 = vector.broadcast %36 : vector<1x8xf32> to vector<2x8xf32>
    %273 = arith.mulf %271, %272 : vector<2x8xf32>
    %274 = arith.addf %269, %273 : vector<2x8xf32>
    %275 = arith.mulf %274, %8 : vector<2x8xf32>
    %276 = math.tanh %275 : vector<2x8xf32>
    %cst_40 = arith.constant 1.000000e+00 : f32
    %277 = vector.broadcast %cst_40 : f32 to vector<2x8xf32>
    %278 = arith.addf %276, %277 : vector<2x8xf32>
    %cst_41 = arith.constant 5.000000e-01 : f32
    %279 = vector.broadcast %cst_41 : f32 to vector<2x8xf32>
    %280 = arith.mulf %279, %278 : vector<2x8xf32>
    %281 = arith.select %5, %276, %280 : vector<2x8xi1>, vector<2x8xf32>
    %282 = vector.extract_strided_slice %281 {offsets = [0, 0], sizes = [2, 2], strides = [1, 1]} : vector<2x8xf32> to vector<2x2xf32>
    %283 = vector.extract_strided_slice %281 {offsets = [0, 2], sizes = [2, 2], strides = [1, 1]} : vector<2x8xf32> to vector<2x2xf32>
    %284 = vector.extract_strided_slice %281 {offsets = [0, 4], sizes = [2, 2], strides = [1, 1]} : vector<2x8xf32> to vector<2x2xf32>
    %285 = vector.extract_strided_slice %281 {offsets = [0, 6], sizes = [2, 2], strides = [1, 1]} : vector<2x8xf32> to vector<2x2xf32>
    %286 = arith.mulf %283, %252 : vector<2x2xf32>
    %287 = arith.mulf %282, %284 : vector<2x2xf32>
    %288 = arith.addf %286, %287 : vector<2x2xf32>
    %289 = math.tanh %288 : vector<2x2xf32>
    %290 = arith.mulf %285, %289 : vector<2x2xf32>
    %291 = vector.extract_strided_slice %24 {offsets = [0, 0], sizes = [2, 1], strides = [1, 1]} : vector<2x2xf32> to vector<2x1xf32>
    %292 = vector.broadcast %291 : vector<2x1xf32> to vector<2x8xf32>
    %293 = vector.broadcast %33 : vector<1x8xf32> to vector<2x8xf32>
    %294 = arith.mulf %292, %293 : vector<2x8xf32>
    %295 = arith.addf %32, %294 : vector<2x8xf32>
    %296 = vector.extract_strided_slice %24 {offsets = [0, 1], sizes = [2, 1], strides = [1, 1]} : vector<2x2xf32> to vector<2x1xf32>
    %297 = vector.broadcast %296 : vector<2x1xf32> to vector<2x8xf32>
    %298 = vector.broadcast %34 : vector<1x8xf32> to vector<2x8xf32>
    %299 = arith.mulf %297, %298 : vector<2x8xf32>
    %300 = arith.addf %295, %299 : vector<2x8xf32>
    %301 = vector.extract_strided_slice %290 {offsets = [0, 0], sizes = [2, 1], strides = [1, 1]} : vector<2x2xf32> to vector<2x1xf32>
    %302 = vector.broadcast %301 : vector<2x1xf32> to vector<2x8xf32>
    %303 = vector.broadcast %35 : vector<1x8xf32> to vector<2x8xf32>
    %304 = arith.mulf %302, %303 : vector<2x8xf32>
    %305 = arith.addf %300, %304 : vector<2x8xf32>
    %306 = vector.extract_strided_slice %290 {offsets = [0, 1], sizes = [2, 1], strides = [1, 1]} : vector<2x2xf32> to vector<2x1xf32>
    %307 = vector.broadcast %306 : vector<2x1xf32> to vector<2x8xf32>
    %308 = vector.broadcast %36 : vector<1x8xf32> to vector<2x8xf32>
    %309 = arith.mulf %307, %308 : vector<2x8xf32>
    %310 = arith.addf %305, %309 : vector<2x8xf32>
    %311 = arith.mulf %310, %8 : vector<2x8xf32>
    %312 = math.tanh %311 : vector<2x8xf32>
    %cst_42 = arith.constant 1.000000e+00 : f32
    %313 = vector.broadcast %cst_42 : f32 to vector<2x8xf32>
    %314 = arith.addf %312, %313 : vector<2x8xf32>
    %cst_43 = arith.constant 5.000000e-01 : f32
    %315 = vector.broadcast %cst_43 : f32 to vector<2x8xf32>
    %316 = arith.mulf %315, %314 : vector<2x8xf32>
    %317 = arith.select %5, %312, %316 : vector<2x8xi1>, vector<2x8xf32>
    %318 = vector.extract_strided_slice %317 {offsets = [0, 0], sizes = [2, 2], strides = [1, 1]} : vector<2x8xf32> to vector<2x2xf32>
    %319 = vector.extract_strided_slice %317 {offsets = [0, 2], sizes = [2, 2], strides = [1, 1]} : vector<2x8xf32> to vector<2x2xf32>
    %320 = vector.extract_strided_slice %317 {offsets = [0, 4], sizes = [2, 2], strides = [1, 1]} : vector<2x8xf32> to vector<2x2xf32>
    %321 = vector.extract_strided_slice %317 {offsets = [0, 6], sizes = [2, 2], strides = [1, 1]} : vector<2x8xf32> to vector<2x2xf32>
    %322 = arith.mulf %319, %288 : vector<2x2xf32>
    %323 = arith.mulf %318, %320 : vector<2x2xf32>
    %324 = arith.addf %322, %323 : vector<2x2xf32>
    %325 = math.tanh %324 : vector<2x2xf32>
    %326 = arith.mulf %321, %325 : vector<2x2xf32>
    %c1_44 = arith.constant 1 : index
    %c0_45 = arith.constant 0 : index
    %c0_46 = arith.constant 0 : index
    %327 = vector.load %arg1[%c1_44, %c0_45, %c0_46] : memref<3x2x8xf32, #tpu.memory_space<vmem>>, vector<1x2x8xf32>
    %328 = vector.shape_cast %327 : vector<1x2x8xf32> to vector<2x8xf32>
    %c1_47 = arith.constant 1 : index
    %c0_48 = arith.constant 0 : index
    %c0_49 = arith.constant 0 : index
    %329 = vector.load %arg2[%c1_47, %c0_48, %c0_49] : memref<3x2x8xf32, #tpu.memory_space<vmem>>, vector<1x2x8xf32>
    %330 = vector.shape_cast %329 : vector<1x2x8xf32> to vector<2x8xf32>
    %c1_50 = arith.constant 1 : index
    %c0_51 = arith.constant 0 : index
    %c0_52 = arith.constant 0 : index
    %331 = vector.load %arg3[%c1_50, %c0_51, %c0_52] : memref<3x1x8xf32, #tpu.memory_space<vmem>>, vector<1x1x8xf32>
    %332 = vector.shape_cast %331 : vector<1x1x8xf32> to vector<1x8xf32>
    %333 = vector.shape_cast %332 : vector<1x8xf32> to vector<1x8xf32>
    %334 = vector.broadcast %333 : vector<1x8xf32> to vector<2x8xf32>
    %335 = vector.extract_strided_slice %328 {offsets = [0, 0], sizes = [1, 8], strides = [1, 1]} : vector<2x8xf32> to vector<1x8xf32>
    %336 = vector.extract_strided_slice %328 {offsets = [1, 0], sizes = [1, 8], strides = [1, 1]} : vector<2x8xf32> to vector<1x8xf32>
    %337 = vector.extract_strided_slice %330 {offsets = [0, 0], sizes = [1, 8], strides = [1, 1]} : vector<2x8xf32> to vector<1x8xf32>
    %338 = vector.extract_strided_slice %330 {offsets = [1, 0], sizes = [1, 8], strides = [1, 1]} : vector<2x8xf32> to vector<1x8xf32>
    %cst_53 = arith.constant 0.000000e+00 : f32
    %339 = vector.broadcast %cst_53 : f32 to vector<2x2xf32>
    %cst_54 = arith.constant 0.000000e+00 : f32
    %340 = vector.broadcast %cst_54 : f32 to vector<2x2xf32>
    %341 = vector.extract_strided_slice %74 {offsets = [0, 0], sizes = [2, 1], strides = [1, 1]} : vector<2x2xf32> to vector<2x1xf32>
    %342 = vector.broadcast %341 : vector<2x1xf32> to vector<2x8xf32>
    %343 = vector.broadcast %335 : vector<1x8xf32> to vector<2x8xf32>
    %344 = arith.mulf %342, %343 : vector<2x8xf32>
    %345 = arith.addf %334, %344 : vector<2x8xf32>
    %346 = vector.extract_strided_slice %74 {offsets = [0, 1], sizes = [2, 1], strides = [1, 1]} : vector<2x2xf32> to vector<2x1xf32>
    %347 = vector.broadcast %346 : vector<2x1xf32> to vector<2x8xf32>
    %348 = vector.broadcast %336 : vector<1x8xf32> to vector<2x8xf32>
    %349 = arith.mulf %347, %348 : vector<2x8xf32>
    %350 = arith.addf %345, %349 : vector<2x8xf32>
    %351 = vector.extract_strided_slice %339 {offsets = [0, 0], sizes = [2, 1], strides = [1, 1]} : vector<2x2xf32> to vector<2x1xf32>
    %352 = vector.broadcast %351 : vector<2x1xf32> to vector<2x8xf32>
    %353 = vector.broadcast %337 : vector<1x8xf32> to vector<2x8xf32>
    %354 = arith.mulf %352, %353 : vector<2x8xf32>
    %355 = arith.addf %350, %354 : vector<2x8xf32>
    %356 = vector.extract_strided_slice %339 {offsets = [0, 1], sizes = [2, 1], strides = [1, 1]} : vector<2x2xf32> to vector<2x1xf32>
    %357 = vector.broadcast %356 : vector<2x1xf32> to vector<2x8xf32>
    %358 = vector.broadcast %338 : vector<1x8xf32> to vector<2x8xf32>
    %359 = arith.mulf %357, %358 : vector<2x8xf32>
    %360 = arith.addf %355, %359 : vector<2x8xf32>
    %361 = arith.mulf %360, %8 : vector<2x8xf32>
    %362 = math.tanh %361 : vector<2x8xf32>
    %cst_55 = arith.constant 1.000000e+00 : f32
    %363 = vector.broadcast %cst_55 : f32 to vector<2x8xf32>
    %364 = arith.addf %362, %363 : vector<2x8xf32>
    %cst_56 = arith.constant 5.000000e-01 : f32
    %365 = vector.broadcast %cst_56 : f32 to vector<2x8xf32>
    %366 = arith.mulf %365, %364 : vector<2x8xf32>
    %367 = arith.select %5, %362, %366 : vector<2x8xi1>, vector<2x8xf32>
    %368 = vector.extract_strided_slice %367 {offsets = [0, 0], sizes = [2, 2], strides = [1, 1]} : vector<2x8xf32> to vector<2x2xf32>
    %369 = vector.extract_strided_slice %367 {offsets = [0, 2], sizes = [2, 2], strides = [1, 1]} : vector<2x8xf32> to vector<2x2xf32>
    %370 = vector.extract_strided_slice %367 {offsets = [0, 4], sizes = [2, 2], strides = [1, 1]} : vector<2x8xf32> to vector<2x2xf32>
    %371 = vector.extract_strided_slice %367 {offsets = [0, 6], sizes = [2, 2], strides = [1, 1]} : vector<2x8xf32> to vector<2x2xf32>
    %372 = arith.mulf %369, %340 : vector<2x2xf32>
    %373 = arith.mulf %368, %370 : vector<2x2xf32>
    %374 = arith.addf %372, %373 : vector<2x2xf32>
    %375 = math.tanh %374 : vector<2x2xf32>
    %376 = arith.mulf %371, %375 : vector<2x2xf32>
    %377 = vector.extract_strided_slice %110 {offsets = [0, 0], sizes = [2, 1], strides = [1, 1]} : vector<2x2xf32> to vector<2x1xf32>
    %378 = vector.broadcast %377 : vector<2x1xf32> to vector<2x8xf32>
    %379 = vector.broadcast %335 : vector<1x8xf32> to vector<2x8xf32>
    %380 = arith.mulf %378, %379 : vector<2x8xf32>
    %381 = arith.addf %334, %380 : vector<2x8xf32>
    %382 = vector.extract_strided_slice %110 {offsets = [0, 1], sizes = [2, 1], strides = [1, 1]} : vector<2x2xf32> to vector<2x1xf32>
    %383 = vector.broadcast %382 : vector<2x1xf32> to vector<2x8xf32>
    %384 = vector.broadcast %336 : vector<1x8xf32> to vector<2x8xf32>
    %385 = arith.mulf %383, %384 : vector<2x8xf32>
    %386 = arith.addf %381, %385 : vector<2x8xf32>
    %387 = vector.extract_strided_slice %376 {offsets = [0, 0], sizes = [2, 1], strides = [1, 1]} : vector<2x2xf32> to vector<2x1xf32>
    %388 = vector.broadcast %387 : vector<2x1xf32> to vector<2x8xf32>
    %389 = vector.broadcast %337 : vector<1x8xf32> to vector<2x8xf32>
    %390 = arith.mulf %388, %389 : vector<2x8xf32>
    %391 = arith.addf %386, %390 : vector<2x8xf32>
    %392 = vector.extract_strided_slice %376 {offsets = [0, 1], sizes = [2, 1], strides = [1, 1]} : vector<2x2xf32> to vector<2x1xf32>
    %393 = vector.broadcast %392 : vector<2x1xf32> to vector<2x8xf32>
    %394 = vector.broadcast %338 : vector<1x8xf32> to vector<2x8xf32>
    %395 = arith.mulf %393, %394 : vector<2x8xf32>
    %396 = arith.addf %391, %395 : vector<2x8xf32>
    %397 = arith.mulf %396, %8 : vector<2x8xf32>
    %398 = math.tanh %397 : vector<2x8xf32>
    %cst_57 = arith.constant 1.000000e+00 : f32
    %399 = vector.broadcast %cst_57 : f32 to vector<2x8xf32>
    %400 = arith.addf %398, %399 : vector<2x8xf32>
    %cst_58 = arith.constant 5.000000e-01 : f32
    %401 = vector.broadcast %cst_58 : f32 to vector<2x8xf32>
    %402 = arith.mulf %401, %400 : vector<2x8xf32>
    %403 = arith.select %5, %398, %402 : vector<2x8xi1>, vector<2x8xf32>
    %404 = vector.extract_strided_slice %403 {offsets = [0, 0], sizes = [2, 2], strides = [1, 1]} : vector<2x8xf32> to vector<2x2xf32>
    %405 = vector.extract_strided_slice %403 {offsets = [0, 2], sizes = [2, 2], strides = [1, 1]} : vector<2x8xf32> to vector<2x2xf32>
    %406 = vector.extract_strided_slice %403 {offsets = [0, 4], sizes = [2, 2], strides = [1, 1]} : vector<2x8xf32> to vector<2x2xf32>
    %407 = vector.extract_strided_slice %403 {offsets = [0, 6], sizes = [2, 2], strides = [1, 1]} : vector<2x8xf32> to vector<2x2xf32>
    %408 = arith.mulf %405, %374 : vector<2x2xf32>
    %409 = arith.mulf %404, %406 : vector<2x2xf32>
    %410 = arith.addf %408, %409 : vector<2x2xf32>
    %411 = math.tanh %410 : vector<2x2xf32>
    %412 = arith.mulf %407, %411 : vector<2x2xf32>
    %413 = vector.extract_strided_slice %146 {offsets = [0, 0], sizes = [2, 1], strides = [1, 1]} : vector<2x2xf32> to vector<2x1xf32>
    %414 = vector.broadcast %413 : vector<2x1xf32> to vector<2x8xf32>
    %415 = vector.broadcast %335 : vector<1x8xf32> to vector<2x8xf32>
    %416 = arith.mulf %414, %415 : vector<2x8xf32>
    %417 = arith.addf %334, %416 : vector<2x8xf32>
    %418 = vector.extract_strided_slice %146 {offsets = [0, 1], sizes = [2, 1], strides = [1, 1]} : vector<2x2xf32> to vector<2x1xf32>
    %419 = vector.broadcast %418 : vector<2x1xf32> to vector<2x8xf32>
    %420 = vector.broadcast %336 : vector<1x8xf32> to vector<2x8xf32>
    %421 = arith.mulf %419, %420 : vector<2x8xf32>
    %422 = arith.addf %417, %421 : vector<2x8xf32>
    %423 = vector.extract_strided_slice %412 {offsets = [0, 0], sizes = [2, 1], strides = [1, 1]} : vector<2x2xf32> to vector<2x1xf32>
    %424 = vector.broadcast %423 : vector<2x1xf32> to vector<2x8xf32>
    %425 = vector.broadcast %337 : vector<1x8xf32> to vector<2x8xf32>
    %426 = arith.mulf %424, %425 : vector<2x8xf32>
    %427 = arith.addf %422, %426 : vector<2x8xf32>
    %428 = vector.extract_strided_slice %412 {offsets = [0, 1], sizes = [2, 1], strides = [1, 1]} : vector<2x2xf32> to vector<2x1xf32>
    %429 = vector.broadcast %428 : vector<2x1xf32> to vector<2x8xf32>
    %430 = vector.broadcast %338 : vector<1x8xf32> to vector<2x8xf32>
    %431 = arith.mulf %429, %430 : vector<2x8xf32>
    %432 = arith.addf %427, %431 : vector<2x8xf32>
    %433 = arith.mulf %432, %8 : vector<2x8xf32>
    %434 = math.tanh %433 : vector<2x8xf32>
    %cst_59 = arith.constant 1.000000e+00 : f32
    %435 = vector.broadcast %cst_59 : f32 to vector<2x8xf32>
    %436 = arith.addf %434, %435 : vector<2x8xf32>
    %cst_60 = arith.constant 5.000000e-01 : f32
    %437 = vector.broadcast %cst_60 : f32 to vector<2x8xf32>
    %438 = arith.mulf %437, %436 : vector<2x8xf32>
    %439 = arith.select %5, %434, %438 : vector<2x8xi1>, vector<2x8xf32>
    %440 = vector.extract_strided_slice %439 {offsets = [0, 0], sizes = [2, 2], strides = [1, 1]} : vector<2x8xf32> to vector<2x2xf32>
    %441 = vector.extract_strided_slice %439 {offsets = [0, 2], sizes = [2, 2], strides = [1, 1]} : vector<2x8xf32> to vector<2x2xf32>
    %442 = vector.extract_strided_slice %439 {offsets = [0, 4], sizes = [2, 2], strides = [1, 1]} : vector<2x8xf32> to vector<2x2xf32>
    %443 = vector.extract_strided_slice %439 {offsets = [0, 6], sizes = [2, 2], strides = [1, 1]} : vector<2x8xf32> to vector<2x2xf32>
    %444 = arith.mulf %441, %410 : vector<2x2xf32>
    %445 = arith.mulf %440, %442 : vector<2x2xf32>
    %446 = arith.addf %444, %445 : vector<2x2xf32>
    %447 = math.tanh %446 : vector<2x2xf32>
    %448 = arith.mulf %443, %447 : vector<2x2xf32>
    %449 = vector.extract_strided_slice %182 {offsets = [0, 0], sizes = [2, 1], strides = [1, 1]} : vector<2x2xf32> to vector<2x1xf32>
    %450 = vector.broadcast %449 : vector<2x1xf32> to vector<2x8xf32>
    %451 = vector.broadcast %335 : vector<1x8xf32> to vector<2x8xf32>
    %452 = arith.mulf %450, %451 : vector<2x8xf32>
    %453 = arith.addf %334, %452 : vector<2x8xf32>
    %454 = vector.extract_strided_slice %182 {offsets = [0, 1], sizes = [2, 1], strides = [1, 1]} : vector<2x2xf32> to vector<2x1xf32>
    %455 = vector.broadcast %454 : vector<2x1xf32> to vector<2x8xf32>
    %456 = vector.broadcast %336 : vector<1x8xf32> to vector<2x8xf32>
    %457 = arith.mulf %455, %456 : vector<2x8xf32>
    %458 = arith.addf %453, %457 : vector<2x8xf32>
    %459 = vector.extract_strided_slice %448 {offsets = [0, 0], sizes = [2, 1], strides = [1, 1]} : vector<2x2xf32> to vector<2x1xf32>
    %460 = vector.broadcast %459 : vector<2x1xf32> to vector<2x8xf32>
    %461 = vector.broadcast %337 : vector<1x8xf32> to vector<2x8xf32>
    %462 = arith.mulf %460, %461 : vector<2x8xf32>
    %463 = arith.addf %458, %462 : vector<2x8xf32>
    %464 = vector.extract_strided_slice %448 {offsets = [0, 1], sizes = [2, 1], strides = [1, 1]} : vector<2x2xf32> to vector<2x1xf32>
    %465 = vector.broadcast %464 : vector<2x1xf32> to vector<2x8xf32>
    %466 = vector.broadcast %338 : vector<1x8xf32> to vector<2x8xf32>
    %467 = arith.mulf %465, %466 : vector<2x8xf32>
    %468 = arith.addf %463, %467 : vector<2x8xf32>
    %469 = arith.mulf %468, %8 : vector<2x8xf32>
    %470 = math.tanh %469 : vector<2x8xf32>
    %cst_61 = arith.constant 1.000000e+00 : f32
    %471 = vector.broadcast %cst_61 : f32 to vector<2x8xf32>
    %472 = arith.addf %470, %471 : vector<2x8xf32>
    %cst_62 = arith.constant 5.000000e-01 : f32
    %473 = vector.broadcast %cst_62 : f32 to vector<2x8xf32>
    %474 = arith.mulf %473, %472 : vector<2x8xf32>
    %475 = arith.select %5, %470, %474 : vector<2x8xi1>, vector<2x8xf32>
    %476 = vector.extract_strided_slice %475 {offsets = [0, 0], sizes = [2, 2], strides = [1, 1]} : vector<2x8xf32> to vector<2x2xf32>
    %477 = vector.extract_strided_slice %475 {offsets = [0, 2], sizes = [2, 2], strides = [1, 1]} : vector<2x8xf32> to vector<2x2xf32>
    %478 = vector.extract_strided_slice %475 {offsets = [0, 4], sizes = [2, 2], strides = [1, 1]} : vector<2x8xf32> to vector<2x2xf32>
    %479 = vector.extract_strided_slice %475 {offsets = [0, 6], sizes = [2, 2], strides = [1, 1]} : vector<2x8xf32> to vector<2x2xf32>
    %480 = arith.mulf %477, %446 : vector<2x2xf32>
    %481 = arith.mulf %476, %478 : vector<2x2xf32>
    %482 = arith.addf %480, %481 : vector<2x2xf32>
    %483 = math.tanh %482 : vector<2x2xf32>
    %484 = arith.mulf %479, %483 : vector<2x2xf32>
    %485 = vector.extract_strided_slice %218 {offsets = [0, 0], sizes = [2, 1], strides = [1, 1]} : vector<2x2xf32> to vector<2x1xf32>
    %486 = vector.broadcast %485 : vector<2x1xf32> to vector<2x8xf32>
    %487 = vector.broadcast %335 : vector<1x8xf32> to vector<2x8xf32>
    %488 = arith.mulf %486, %487 : vector<2x8xf32>
    %489 = arith.addf %334, %488 : vector<2x8xf32>
    %490 = vector.extract_strided_slice %218 {offsets = [0, 1], sizes = [2, 1], strides = [1, 1]} : vector<2x2xf32> to vector<2x1xf32>
    %491 = vector.broadcast %490 : vector<2x1xf32> to vector<2x8xf32>
    %492 = vector.broadcast %336 : vector<1x8xf32> to vector<2x8xf32>
    %493 = arith.mulf %491, %492 : vector<2x8xf32>
    %494 = arith.addf %489, %493 : vector<2x8xf32>
    %495 = vector.extract_strided_slice %484 {offsets = [0, 0], sizes = [2, 1], strides = [1, 1]} : vector<2x2xf32> to vector<2x1xf32>
    %496 = vector.broadcast %495 : vector<2x1xf32> to vector<2x8xf32>
    %497 = vector.broadcast %337 : vector<1x8xf32> to vector<2x8xf32>
    %498 = arith.mulf %496, %497 : vector<2x8xf32>
    %499 = arith.addf %494, %498 : vector<2x8xf32>
    %500 = vector.extract_strided_slice %484 {offsets = [0, 1], sizes = [2, 1], strides = [1, 1]} : vector<2x2xf32> to vector<2x1xf32>
    %501 = vector.broadcast %500 : vector<2x1xf32> to vector<2x8xf32>
    %502 = vector.broadcast %338 : vector<1x8xf32> to vector<2x8xf32>
    %503 = arith.mulf %501, %502 : vector<2x8xf32>
    %504 = arith.addf %499, %503 : vector<2x8xf32>
    %505 = arith.mulf %504, %8 : vector<2x8xf32>
    %506 = math.tanh %505 : vector<2x8xf32>
    %cst_63 = arith.constant 1.000000e+00 : f32
    %507 = vector.broadcast %cst_63 : f32 to vector<2x8xf32>
    %508 = arith.addf %506, %507 : vector<2x8xf32>
    %cst_64 = arith.constant 5.000000e-01 : f32
    %509 = vector.broadcast %cst_64 : f32 to vector<2x8xf32>
    %510 = arith.mulf %509, %508 : vector<2x8xf32>
    %511 = arith.select %5, %506, %510 : vector<2x8xi1>, vector<2x8xf32>
    %512 = vector.extract_strided_slice %511 {offsets = [0, 0], sizes = [2, 2], strides = [1, 1]} : vector<2x8xf32> to vector<2x2xf32>
    %513 = vector.extract_strided_slice %511 {offsets = [0, 2], sizes = [2, 2], strides = [1, 1]} : vector<2x8xf32> to vector<2x2xf32>
    %514 = vector.extract_strided_slice %511 {offsets = [0, 4], sizes = [2, 2], strides = [1, 1]} : vector<2x8xf32> to vector<2x2xf32>
    %515 = vector.extract_strided_slice %511 {offsets = [0, 6], sizes = [2, 2], strides = [1, 1]} : vector<2x8xf32> to vector<2x2xf32>
    %516 = arith.mulf %513, %482 : vector<2x2xf32>
    %517 = arith.mulf %512, %514 : vector<2x2xf32>
    %518 = arith.addf %516, %517 : vector<2x2xf32>
    %519 = math.tanh %518 : vector<2x2xf32>
    %520 = arith.mulf %515, %519 : vector<2x2xf32>
    %521 = vector.extract_strided_slice %254 {offsets = [0, 0], sizes = [2, 1], strides = [1, 1]} : vector<2x2xf32> to vector<2x1xf32>
    %522 = vector.broadcast %521 : vector<2x1xf32> to vector<2x8xf32>
    %523 = vector.broadcast %335 : vector<1x8xf32> to vector<2x8xf32>
    %524 = arith.mulf %522, %523 : vector<2x8xf32>
    %525 = arith.addf %334, %524 : vector<2x8xf32>
    %526 = vector.extract_strided_slice %254 {offsets = [0, 1], sizes = [2, 1], strides = [1, 1]} : vector<2x2xf32> to vector<2x1xf32>
    %527 = vector.broadcast %526 : vector<2x1xf32> to vector<2x8xf32>
    %528 = vector.broadcast %336 : vector<1x8xf32> to vector<2x8xf32>
    %529 = arith.mulf %527, %528 : vector<2x8xf32>
    %530 = arith.addf %525, %529 : vector<2x8xf32>
    %531 = vector.extract_strided_slice %520 {offsets = [0, 0], sizes = [2, 1], strides = [1, 1]} : vector<2x2xf32> to vector<2x1xf32>
    %532 = vector.broadcast %531 : vector<2x1xf32> to vector<2x8xf32>
    %533 = vector.broadcast %337 : vector<1x8xf32> to vector<2x8xf32>
    %534 = arith.mulf %532, %533 : vector<2x8xf32>
    %535 = arith.addf %530, %534 : vector<2x8xf32>
    %536 = vector.extract_strided_slice %520 {offsets = [0, 1], sizes = [2, 1], strides = [1, 1]} : vector<2x2xf32> to vector<2x1xf32>
    %537 = vector.broadcast %536 : vector<2x1xf32> to vector<2x8xf32>
    %538 = vector.broadcast %338 : vector<1x8xf32> to vector<2x8xf32>
    %539 = arith.mulf %537, %538 : vector<2x8xf32>
    %540 = arith.addf %535, %539 : vector<2x8xf32>
    %541 = arith.mulf %540, %8 : vector<2x8xf32>
    %542 = math.tanh %541 : vector<2x8xf32>
    %cst_65 = arith.constant 1.000000e+00 : f32
    %543 = vector.broadcast %cst_65 : f32 to vector<2x8xf32>
    %544 = arith.addf %542, %543 : vector<2x8xf32>
    %cst_66 = arith.constant 5.000000e-01 : f32
    %545 = vector.broadcast %cst_66 : f32 to vector<2x8xf32>
    %546 = arith.mulf %545, %544 : vector<2x8xf32>
    %547 = arith.select %5, %542, %546 : vector<2x8xi1>, vector<2x8xf32>
    %548 = vector.extract_strided_slice %547 {offsets = [0, 0], sizes = [2, 2], strides = [1, 1]} : vector<2x8xf32> to vector<2x2xf32>
    %549 = vector.extract_strided_slice %547 {offsets = [0, 2], sizes = [2, 2], strides = [1, 1]} : vector<2x8xf32> to vector<2x2xf32>
    %550 = vector.extract_strided_slice %547 {offsets = [0, 4], sizes = [2, 2], strides = [1, 1]} : vector<2x8xf32> to vector<2x2xf32>
    %551 = vector.extract_strided_slice %547 {offsets = [0, 6], sizes = [2, 2], strides = [1, 1]} : vector<2x8xf32> to vector<2x2xf32>
    %552 = arith.mulf %549, %518 : vector<2x2xf32>
    %553 = arith.mulf %548, %550 : vector<2x2xf32>
    %554 = arith.addf %552, %553 : vector<2x2xf32>
    %555 = math.tanh %554 : vector<2x2xf32>
    %556 = arith.mulf %551, %555 : vector<2x2xf32>
    %557 = vector.extract_strided_slice %290 {offsets = [0, 0], sizes = [2, 1], strides = [1, 1]} : vector<2x2xf32> to vector<2x1xf32>
    %558 = vector.broadcast %557 : vector<2x1xf32> to vector<2x8xf32>
    %559 = vector.broadcast %335 : vector<1x8xf32> to vector<2x8xf32>
    %560 = arith.mulf %558, %559 : vector<2x8xf32>
    %561 = arith.addf %334, %560 : vector<2x8xf32>
    %562 = vector.extract_strided_slice %290 {offsets = [0, 1], sizes = [2, 1], strides = [1, 1]} : vector<2x2xf32> to vector<2x1xf32>
    %563 = vector.broadcast %562 : vector<2x1xf32> to vector<2x8xf32>
    %564 = vector.broadcast %336 : vector<1x8xf32> to vector<2x8xf32>
    %565 = arith.mulf %563, %564 : vector<2x8xf32>
    %566 = arith.addf %561, %565 : vector<2x8xf32>
    %567 = vector.extract_strided_slice %556 {offsets = [0, 0], sizes = [2, 1], strides = [1, 1]} : vector<2x2xf32> to vector<2x1xf32>
    %568 = vector.broadcast %567 : vector<2x1xf32> to vector<2x8xf32>
    %569 = vector.broadcast %337 : vector<1x8xf32> to vector<2x8xf32>
    %570 = arith.mulf %568, %569 : vector<2x8xf32>
    %571 = arith.addf %566, %570 : vector<2x8xf32>
    %572 = vector.extract_strided_slice %556 {offsets = [0, 1], sizes = [2, 1], strides = [1, 1]} : vector<2x2xf32> to vector<2x1xf32>
    %573 = vector.broadcast %572 : vector<2x1xf32> to vector<2x8xf32>
    %574 = vector.broadcast %338 : vector<1x8xf32> to vector<2x8xf32>
    %575 = arith.mulf %573, %574 : vector<2x8xf32>
    %576 = arith.addf %571, %575 : vector<2x8xf32>
    %577 = arith.mulf %576, %8 : vector<2x8xf32>
    %578 = math.tanh %577 : vector<2x8xf32>
    %cst_67 = arith.constant 1.000000e+00 : f32
    %579 = vector.broadcast %cst_67 : f32 to vector<2x8xf32>
    %580 = arith.addf %578, %579 : vector<2x8xf32>
    %cst_68 = arith.constant 5.000000e-01 : f32
    %581 = vector.broadcast %cst_68 : f32 to vector<2x8xf32>
    %582 = arith.mulf %581, %580 : vector<2x8xf32>
    %583 = arith.select %5, %578, %582 : vector<2x8xi1>, vector<2x8xf32>
    %584 = vector.extract_strided_slice %583 {offsets = [0, 0], sizes = [2, 2], strides = [1, 1]} : vector<2x8xf32> to vector<2x2xf32>
    %585 = vector.extract_strided_slice %583 {offsets = [0, 2], sizes = [2, 2], strides = [1, 1]} : vector<2x8xf32> to vector<2x2xf32>
    %586 = vector.extract_strided_slice %583 {offsets = [0, 4], sizes = [2, 2], strides = [1, 1]} : vector<2x8xf32> to vector<2x2xf32>
    %587 = vector.extract_strided_slice %583 {offsets = [0, 6], sizes = [2, 2], strides = [1, 1]} : vector<2x8xf32> to vector<2x2xf32>
    %588 = arith.mulf %585, %554 : vector<2x2xf32>
    %589 = arith.mulf %584, %586 : vector<2x2xf32>
    %590 = arith.addf %588, %589 : vector<2x2xf32>
    %591 = math.tanh %590 : vector<2x2xf32>
    %592 = arith.mulf %587, %591 : vector<2x2xf32>
    %593 = vector.extract_strided_slice %326 {offsets = [0, 0], sizes = [2, 1], strides = [1, 1]} : vector<2x2xf32> to vector<2x1xf32>
    %594 = vector.broadcast %593 : vector<2x1xf32> to vector<2x8xf32>
    %595 = vector.broadcast %335 : vector<1x8xf32> to vector<2x8xf32>
    %596 = arith.mulf %594, %595 : vector<2x8xf32>
    %597 = arith.addf %334, %596 : vector<2x8xf32>
    %598 = vector.extract_strided_slice %326 {offsets = [0, 1], sizes = [2, 1], strides = [1, 1]} : vector<2x2xf32> to vector<2x1xf32>
    %599 = vector.broadcast %598 : vector<2x1xf32> to vector<2x8xf32>
    %600 = vector.broadcast %336 : vector<1x8xf32> to vector<2x8xf32>
    %601 = arith.mulf %599, %600 : vector<2x8xf32>
    %602 = arith.addf %597, %601 : vector<2x8xf32>
    %603 = vector.extract_strided_slice %592 {offsets = [0, 0], sizes = [2, 1], strides = [1, 1]} : vector<2x2xf32> to vector<2x1xf32>
    %604 = vector.broadcast %603 : vector<2x1xf32> to vector<2x8xf32>
    %605 = vector.broadcast %337 : vector<1x8xf32> to vector<2x8xf32>
    %606 = arith.mulf %604, %605 : vector<2x8xf32>
    %607 = arith.addf %602, %606 : vector<2x8xf32>
    %608 = vector.extract_strided_slice %592 {offsets = [0, 1], sizes = [2, 1], strides = [1, 1]} : vector<2x2xf32> to vector<2x1xf32>
    %609 = vector.broadcast %608 : vector<2x1xf32> to vector<2x8xf32>
    %610 = vector.broadcast %338 : vector<1x8xf32> to vector<2x8xf32>
    %611 = arith.mulf %609, %610 : vector<2x8xf32>
    %612 = arith.addf %607, %611 : vector<2x8xf32>
    %613 = arith.mulf %612, %8 : vector<2x8xf32>
    %614 = math.tanh %613 : vector<2x8xf32>
    %cst_69 = arith.constant 1.000000e+00 : f32
    %615 = vector.broadcast %cst_69 : f32 to vector<2x8xf32>
    %616 = arith.addf %614, %615 : vector<2x8xf32>
    %cst_70 = arith.constant 5.000000e-01 : f32
    %617 = vector.broadcast %cst_70 : f32 to vector<2x8xf32>
    %618 = arith.mulf %617, %616 : vector<2x8xf32>
    %619 = arith.select %5, %614, %618 : vector<2x8xi1>, vector<2x8xf32>
    %620 = vector.extract_strided_slice %619 {offsets = [0, 0], sizes = [2, 2], strides = [1, 1]} : vector<2x8xf32> to vector<2x2xf32>
    %621 = vector.extract_strided_slice %619 {offsets = [0, 2], sizes = [2, 2], strides = [1, 1]} : vector<2x8xf32> to vector<2x2xf32>
    %622 = vector.extract_strided_slice %619 {offsets = [0, 4], sizes = [2, 2], strides = [1, 1]} : vector<2x8xf32> to vector<2x2xf32>
    %623 = vector.extract_strided_slice %619 {offsets = [0, 6], sizes = [2, 2], strides = [1, 1]} : vector<2x8xf32> to vector<2x2xf32>
    %624 = arith.mulf %621, %590 : vector<2x2xf32>
    %625 = arith.mulf %620, %622 : vector<2x2xf32>
    %626 = arith.addf %624, %625 : vector<2x2xf32>
    %627 = math.tanh %626 : vector<2x2xf32>
    %628 = arith.mulf %623, %627 : vector<2x2xf32>
    %c2_71 = arith.constant 2 : index
    %c0_72 = arith.constant 0 : index
    %c0_73 = arith.constant 0 : index
    %629 = vector.load %arg1[%c2_71, %c0_72, %c0_73] : memref<3x2x8xf32, #tpu.memory_space<vmem>>, vector<1x2x8xf32>
    %630 = vector.shape_cast %629 : vector<1x2x8xf32> to vector<2x8xf32>
    %c2_74 = arith.constant 2 : index
    %c0_75 = arith.constant 0 : index
    %c0_76 = arith.constant 0 : index
    %631 = vector.load %arg2[%c2_74, %c0_75, %c0_76] : memref<3x2x8xf32, #tpu.memory_space<vmem>>, vector<1x2x8xf32>
    %632 = vector.shape_cast %631 : vector<1x2x8xf32> to vector<2x8xf32>
    %c2_77 = arith.constant 2 : index
    %c0_78 = arith.constant 0 : index
    %c0_79 = arith.constant 0 : index
    %633 = vector.load %arg3[%c2_77, %c0_78, %c0_79] : memref<3x1x8xf32, #tpu.memory_space<vmem>>, vector<1x1x8xf32>
    %634 = vector.shape_cast %633 : vector<1x1x8xf32> to vector<1x8xf32>
    %635 = vector.shape_cast %634 : vector<1x8xf32> to vector<1x8xf32>
    %636 = vector.broadcast %635 : vector<1x8xf32> to vector<2x8xf32>
    %637 = vector.extract_strided_slice %630 {offsets = [0, 0], sizes = [1, 8], strides = [1, 1]} : vector<2x8xf32> to vector<1x8xf32>
    %638 = vector.extract_strided_slice %630 {offsets = [1, 0], sizes = [1, 8], strides = [1, 1]} : vector<2x8xf32> to vector<1x8xf32>
    %639 = vector.extract_strided_slice %632 {offsets = [0, 0], sizes = [1, 8], strides = [1, 1]} : vector<2x8xf32> to vector<1x8xf32>
    %640 = vector.extract_strided_slice %632 {offsets = [1, 0], sizes = [1, 8], strides = [1, 1]} : vector<2x8xf32> to vector<1x8xf32>
    %cst_80 = arith.constant 0.000000e+00 : f32
    %641 = vector.broadcast %cst_80 : f32 to vector<2x2xf32>
    %cst_81 = arith.constant 0.000000e+00 : f32
    %642 = vector.broadcast %cst_81 : f32 to vector<2x2xf32>
    %643 = vector.extract_strided_slice %376 {offsets = [0, 0], sizes = [2, 1], strides = [1, 1]} : vector<2x2xf32> to vector<2x1xf32>
    %644 = vector.broadcast %643 : vector<2x1xf32> to vector<2x8xf32>
    %645 = vector.broadcast %637 : vector<1x8xf32> to vector<2x8xf32>
    %646 = arith.mulf %644, %645 : vector<2x8xf32>
    %647 = arith.addf %636, %646 : vector<2x8xf32>
    %648 = vector.extract_strided_slice %376 {offsets = [0, 1], sizes = [2, 1], strides = [1, 1]} : vector<2x2xf32> to vector<2x1xf32>
    %649 = vector.broadcast %648 : vector<2x1xf32> to vector<2x8xf32>
    %650 = vector.broadcast %638 : vector<1x8xf32> to vector<2x8xf32>
    %651 = arith.mulf %649, %650 : vector<2x8xf32>
    %652 = arith.addf %647, %651 : vector<2x8xf32>
    %653 = vector.extract_strided_slice %641 {offsets = [0, 0], sizes = [2, 1], strides = [1, 1]} : vector<2x2xf32> to vector<2x1xf32>
    %654 = vector.broadcast %653 : vector<2x1xf32> to vector<2x8xf32>
    %655 = vector.broadcast %639 : vector<1x8xf32> to vector<2x8xf32>
    %656 = arith.mulf %654, %655 : vector<2x8xf32>
    %657 = arith.addf %652, %656 : vector<2x8xf32>
    %658 = vector.extract_strided_slice %641 {offsets = [0, 1], sizes = [2, 1], strides = [1, 1]} : vector<2x2xf32> to vector<2x1xf32>
    %659 = vector.broadcast %658 : vector<2x1xf32> to vector<2x8xf32>
    %660 = vector.broadcast %640 : vector<1x8xf32> to vector<2x8xf32>
    %661 = arith.mulf %659, %660 : vector<2x8xf32>
    %662 = arith.addf %657, %661 : vector<2x8xf32>
    %663 = arith.mulf %662, %8 : vector<2x8xf32>
    %664 = math.tanh %663 : vector<2x8xf32>
    %cst_82 = arith.constant 1.000000e+00 : f32
    %665 = vector.broadcast %cst_82 : f32 to vector<2x8xf32>
    %666 = arith.addf %664, %665 : vector<2x8xf32>
    %cst_83 = arith.constant 5.000000e-01 : f32
    %667 = vector.broadcast %cst_83 : f32 to vector<2x8xf32>
    %668 = arith.mulf %667, %666 : vector<2x8xf32>
    %669 = arith.select %5, %664, %668 : vector<2x8xi1>, vector<2x8xf32>
    %670 = vector.extract_strided_slice %669 {offsets = [0, 0], sizes = [2, 2], strides = [1, 1]} : vector<2x8xf32> to vector<2x2xf32>
    %671 = vector.extract_strided_slice %669 {offsets = [0, 2], sizes = [2, 2], strides = [1, 1]} : vector<2x8xf32> to vector<2x2xf32>
    %672 = vector.extract_strided_slice %669 {offsets = [0, 4], sizes = [2, 2], strides = [1, 1]} : vector<2x8xf32> to vector<2x2xf32>
    %673 = vector.extract_strided_slice %669 {offsets = [0, 6], sizes = [2, 2], strides = [1, 1]} : vector<2x8xf32> to vector<2x2xf32>
    %674 = arith.mulf %671, %642 : vector<2x2xf32>
    %675 = arith.mulf %670, %672 : vector<2x2xf32>
    %676 = arith.addf %674, %675 : vector<2x2xf32>
    %677 = math.tanh %676 : vector<2x2xf32>
    %678 = arith.mulf %673, %677 : vector<2x2xf32>
    %679 = vector.extract_strided_slice %412 {offsets = [0, 0], sizes = [2, 1], strides = [1, 1]} : vector<2x2xf32> to vector<2x1xf32>
    %680 = vector.broadcast %679 : vector<2x1xf32> to vector<2x8xf32>
    %681 = vector.broadcast %637 : vector<1x8xf32> to vector<2x8xf32>
    %682 = arith.mulf %680, %681 : vector<2x8xf32>
    %683 = arith.addf %636, %682 : vector<2x8xf32>
    %684 = vector.extract_strided_slice %412 {offsets = [0, 1], sizes = [2, 1], strides = [1, 1]} : vector<2x2xf32> to vector<2x1xf32>
    %685 = vector.broadcast %684 : vector<2x1xf32> to vector<2x8xf32>
    %686 = vector.broadcast %638 : vector<1x8xf32> to vector<2x8xf32>
    %687 = arith.mulf %685, %686 : vector<2x8xf32>
    %688 = arith.addf %683, %687 : vector<2x8xf32>
    %689 = vector.extract_strided_slice %678 {offsets = [0, 0], sizes = [2, 1], strides = [1, 1]} : vector<2x2xf32> to vector<2x1xf32>
    %690 = vector.broadcast %689 : vector<2x1xf32> to vector<2x8xf32>
    %691 = vector.broadcast %639 : vector<1x8xf32> to vector<2x8xf32>
    %692 = arith.mulf %690, %691 : vector<2x8xf32>
    %693 = arith.addf %688, %692 : vector<2x8xf32>
    %694 = vector.extract_strided_slice %678 {offsets = [0, 1], sizes = [2, 1], strides = [1, 1]} : vector<2x2xf32> to vector<2x1xf32>
    %695 = vector.broadcast %694 : vector<2x1xf32> to vector<2x8xf32>
    %696 = vector.broadcast %640 : vector<1x8xf32> to vector<2x8xf32>
    %697 = arith.mulf %695, %696 : vector<2x8xf32>
    %698 = arith.addf %693, %697 : vector<2x8xf32>
    %699 = arith.mulf %698, %8 : vector<2x8xf32>
    %700 = math.tanh %699 : vector<2x8xf32>
    %cst_84 = arith.constant 1.000000e+00 : f32
    %701 = vector.broadcast %cst_84 : f32 to vector<2x8xf32>
    %702 = arith.addf %700, %701 : vector<2x8xf32>
    %cst_85 = arith.constant 5.000000e-01 : f32
    %703 = vector.broadcast %cst_85 : f32 to vector<2x8xf32>
    %704 = arith.mulf %703, %702 : vector<2x8xf32>
    %705 = arith.select %5, %700, %704 : vector<2x8xi1>, vector<2x8xf32>
    %706 = vector.extract_strided_slice %705 {offsets = [0, 0], sizes = [2, 2], strides = [1, 1]} : vector<2x8xf32> to vector<2x2xf32>
    %707 = vector.extract_strided_slice %705 {offsets = [0, 2], sizes = [2, 2], strides = [1, 1]} : vector<2x8xf32> to vector<2x2xf32>
    %708 = vector.extract_strided_slice %705 {offsets = [0, 4], sizes = [2, 2], strides = [1, 1]} : vector<2x8xf32> to vector<2x2xf32>
    %709 = vector.extract_strided_slice %705 {offsets = [0, 6], sizes = [2, 2], strides = [1, 1]} : vector<2x8xf32> to vector<2x2xf32>
    %710 = arith.mulf %707, %676 : vector<2x2xf32>
    %711 = arith.mulf %706, %708 : vector<2x2xf32>
    %712 = arith.addf %710, %711 : vector<2x2xf32>
    %713 = math.tanh %712 : vector<2x2xf32>
    %714 = arith.mulf %709, %713 : vector<2x2xf32>
    %715 = vector.extract_strided_slice %448 {offsets = [0, 0], sizes = [2, 1], strides = [1, 1]} : vector<2x2xf32> to vector<2x1xf32>
    %716 = vector.broadcast %715 : vector<2x1xf32> to vector<2x8xf32>
    %717 = vector.broadcast %637 : vector<1x8xf32> to vector<2x8xf32>
    %718 = arith.mulf %716, %717 : vector<2x8xf32>
    %719 = arith.addf %636, %718 : vector<2x8xf32>
    %720 = vector.extract_strided_slice %448 {offsets = [0, 1], sizes = [2, 1], strides = [1, 1]} : vector<2x2xf32> to vector<2x1xf32>
    %721 = vector.broadcast %720 : vector<2x1xf32> to vector<2x8xf32>
    %722 = vector.broadcast %638 : vector<1x8xf32> to vector<2x8xf32>
    %723 = arith.mulf %721, %722 : vector<2x8xf32>
    %724 = arith.addf %719, %723 : vector<2x8xf32>
    %725 = vector.extract_strided_slice %714 {offsets = [0, 0], sizes = [2, 1], strides = [1, 1]} : vector<2x2xf32> to vector<2x1xf32>
    %726 = vector.broadcast %725 : vector<2x1xf32> to vector<2x8xf32>
    %727 = vector.broadcast %639 : vector<1x8xf32> to vector<2x8xf32>
    %728 = arith.mulf %726, %727 : vector<2x8xf32>
    %729 = arith.addf %724, %728 : vector<2x8xf32>
    %730 = vector.extract_strided_slice %714 {offsets = [0, 1], sizes = [2, 1], strides = [1, 1]} : vector<2x2xf32> to vector<2x1xf32>
    %731 = vector.broadcast %730 : vector<2x1xf32> to vector<2x8xf32>
    %732 = vector.broadcast %640 : vector<1x8xf32> to vector<2x8xf32>
    %733 = arith.mulf %731, %732 : vector<2x8xf32>
    %734 = arith.addf %729, %733 : vector<2x8xf32>
    %735 = arith.mulf %734, %8 : vector<2x8xf32>
    %736 = math.tanh %735 : vector<2x8xf32>
    %cst_86 = arith.constant 1.000000e+00 : f32
    %737 = vector.broadcast %cst_86 : f32 to vector<2x8xf32>
    %738 = arith.addf %736, %737 : vector<2x8xf32>
    %cst_87 = arith.constant 5.000000e-01 : f32
    %739 = vector.broadcast %cst_87 : f32 to vector<2x8xf32>
    %740 = arith.mulf %739, %738 : vector<2x8xf32>
    %741 = arith.select %5, %736, %740 : vector<2x8xi1>, vector<2x8xf32>
    %742 = vector.extract_strided_slice %741 {offsets = [0, 0], sizes = [2, 2], strides = [1, 1]} : vector<2x8xf32> to vector<2x2xf32>
    %743 = vector.extract_strided_slice %741 {offsets = [0, 2], sizes = [2, 2], strides = [1, 1]} : vector<2x8xf32> to vector<2x2xf32>
    %744 = vector.extract_strided_slice %741 {offsets = [0, 4], sizes = [2, 2], strides = [1, 1]} : vector<2x8xf32> to vector<2x2xf32>
    %745 = vector.extract_strided_slice %741 {offsets = [0, 6], sizes = [2, 2], strides = [1, 1]} : vector<2x8xf32> to vector<2x2xf32>
    %746 = arith.mulf %743, %712 : vector<2x2xf32>
    %747 = arith.mulf %742, %744 : vector<2x2xf32>
    %748 = arith.addf %746, %747 : vector<2x2xf32>
    %749 = math.tanh %748 : vector<2x2xf32>
    %750 = arith.mulf %745, %749 : vector<2x2xf32>
    %751 = vector.extract_strided_slice %484 {offsets = [0, 0], sizes = [2, 1], strides = [1, 1]} : vector<2x2xf32> to vector<2x1xf32>
    %752 = vector.broadcast %751 : vector<2x1xf32> to vector<2x8xf32>
    %753 = vector.broadcast %637 : vector<1x8xf32> to vector<2x8xf32>
    %754 = arith.mulf %752, %753 : vector<2x8xf32>
    %755 = arith.addf %636, %754 : vector<2x8xf32>
    %756 = vector.extract_strided_slice %484 {offsets = [0, 1], sizes = [2, 1], strides = [1, 1]} : vector<2x2xf32> to vector<2x1xf32>
    %757 = vector.broadcast %756 : vector<2x1xf32> to vector<2x8xf32>
    %758 = vector.broadcast %638 : vector<1x8xf32> to vector<2x8xf32>
    %759 = arith.mulf %757, %758 : vector<2x8xf32>
    %760 = arith.addf %755, %759 : vector<2x8xf32>
    %761 = vector.extract_strided_slice %750 {offsets = [0, 0], sizes = [2, 1], strides = [1, 1]} : vector<2x2xf32> to vector<2x1xf32>
    %762 = vector.broadcast %761 : vector<2x1xf32> to vector<2x8xf32>
    %763 = vector.broadcast %639 : vector<1x8xf32> to vector<2x8xf32>
    %764 = arith.mulf %762, %763 : vector<2x8xf32>
    %765 = arith.addf %760, %764 : vector<2x8xf32>
    %766 = vector.extract_strided_slice %750 {offsets = [0, 1], sizes = [2, 1], strides = [1, 1]} : vector<2x2xf32> to vector<2x1xf32>
    %767 = vector.broadcast %766 : vector<2x1xf32> to vector<2x8xf32>
    %768 = vector.broadcast %640 : vector<1x8xf32> to vector<2x8xf32>
    %769 = arith.mulf %767, %768 : vector<2x8xf32>
    %770 = arith.addf %765, %769 : vector<2x8xf32>
    %771 = arith.mulf %770, %8 : vector<2x8xf32>
    %772 = math.tanh %771 : vector<2x8xf32>
    %cst_88 = arith.constant 1.000000e+00 : f32
    %773 = vector.broadcast %cst_88 : f32 to vector<2x8xf32>
    %774 = arith.addf %772, %773 : vector<2x8xf32>
    %cst_89 = arith.constant 5.000000e-01 : f32
    %775 = vector.broadcast %cst_89 : f32 to vector<2x8xf32>
    %776 = arith.mulf %775, %774 : vector<2x8xf32>
    %777 = arith.select %5, %772, %776 : vector<2x8xi1>, vector<2x8xf32>
    %778 = vector.extract_strided_slice %777 {offsets = [0, 0], sizes = [2, 2], strides = [1, 1]} : vector<2x8xf32> to vector<2x2xf32>
    %779 = vector.extract_strided_slice %777 {offsets = [0, 2], sizes = [2, 2], strides = [1, 1]} : vector<2x8xf32> to vector<2x2xf32>
    %780 = vector.extract_strided_slice %777 {offsets = [0, 4], sizes = [2, 2], strides = [1, 1]} : vector<2x8xf32> to vector<2x2xf32>
    %781 = vector.extract_strided_slice %777 {offsets = [0, 6], sizes = [2, 2], strides = [1, 1]} : vector<2x8xf32> to vector<2x2xf32>
    %782 = arith.mulf %779, %748 : vector<2x2xf32>
    %783 = arith.mulf %778, %780 : vector<2x2xf32>
    %784 = arith.addf %782, %783 : vector<2x2xf32>
    %785 = math.tanh %784 : vector<2x2xf32>
    %786 = arith.mulf %781, %785 : vector<2x2xf32>
    %787 = vector.extract_strided_slice %520 {offsets = [0, 0], sizes = [2, 1], strides = [1, 1]} : vector<2x2xf32> to vector<2x1xf32>
    %788 = vector.broadcast %787 : vector<2x1xf32> to vector<2x8xf32>
    %789 = vector.broadcast %637 : vector<1x8xf32> to vector<2x8xf32>
    %790 = arith.mulf %788, %789 : vector<2x8xf32>
    %791 = arith.addf %636, %790 : vector<2x8xf32>
    %792 = vector.extract_strided_slice %520 {offsets = [0, 1], sizes = [2, 1], strides = [1, 1]} : vector<2x2xf32> to vector<2x1xf32>
    %793 = vector.broadcast %792 : vector<2x1xf32> to vector<2x8xf32>
    %794 = vector.broadcast %638 : vector<1x8xf32> to vector<2x8xf32>
    %795 = arith.mulf %793, %794 : vector<2x8xf32>
    %796 = arith.addf %791, %795 : vector<2x8xf32>
    %797 = vector.extract_strided_slice %786 {offsets = [0, 0], sizes = [2, 1], strides = [1, 1]} : vector<2x2xf32> to vector<2x1xf32>
    %798 = vector.broadcast %797 : vector<2x1xf32> to vector<2x8xf32>
    %799 = vector.broadcast %639 : vector<1x8xf32> to vector<2x8xf32>
    %800 = arith.mulf %798, %799 : vector<2x8xf32>
    %801 = arith.addf %796, %800 : vector<2x8xf32>
    %802 = vector.extract_strided_slice %786 {offsets = [0, 1], sizes = [2, 1], strides = [1, 1]} : vector<2x2xf32> to vector<2x1xf32>
    %803 = vector.broadcast %802 : vector<2x1xf32> to vector<2x8xf32>
    %804 = vector.broadcast %640 : vector<1x8xf32> to vector<2x8xf32>
    %805 = arith.mulf %803, %804 : vector<2x8xf32>
    %806 = arith.addf %801, %805 : vector<2x8xf32>
    %807 = arith.mulf %806, %8 : vector<2x8xf32>
    %808 = math.tanh %807 : vector<2x8xf32>
    %cst_90 = arith.constant 1.000000e+00 : f32
    %809 = vector.broadcast %cst_90 : f32 to vector<2x8xf32>
    %810 = arith.addf %808, %809 : vector<2x8xf32>
    %cst_91 = arith.constant 5.000000e-01 : f32
    %811 = vector.broadcast %cst_91 : f32 to vector<2x8xf32>
    %812 = arith.mulf %811, %810 : vector<2x8xf32>
    %813 = arith.select %5, %808, %812 : vector<2x8xi1>, vector<2x8xf32>
    %814 = vector.extract_strided_slice %813 {offsets = [0, 0], sizes = [2, 2], strides = [1, 1]} : vector<2x8xf32> to vector<2x2xf32>
    %815 = vector.extract_strided_slice %813 {offsets = [0, 2], sizes = [2, 2], strides = [1, 1]} : vector<2x8xf32> to vector<2x2xf32>
    %816 = vector.extract_strided_slice %813 {offsets = [0, 4], sizes = [2, 2], strides = [1, 1]} : vector<2x8xf32> to vector<2x2xf32>
    %817 = vector.extract_strided_slice %813 {offsets = [0, 6], sizes = [2, 2], strides = [1, 1]} : vector<2x8xf32> to vector<2x2xf32>
    %818 = arith.mulf %815, %784 : vector<2x2xf32>
    %819 = arith.mulf %814, %816 : vector<2x2xf32>
    %820 = arith.addf %818, %819 : vector<2x2xf32>
    %821 = math.tanh %820 : vector<2x2xf32>
    %822 = arith.mulf %817, %821 : vector<2x2xf32>
    %823 = vector.extract_strided_slice %556 {offsets = [0, 0], sizes = [2, 1], strides = [1, 1]} : vector<2x2xf32> to vector<2x1xf32>
    %824 = vector.broadcast %823 : vector<2x1xf32> to vector<2x8xf32>
    %825 = vector.broadcast %637 : vector<1x8xf32> to vector<2x8xf32>
    %826 = arith.mulf %824, %825 : vector<2x8xf32>
    %827 = arith.addf %636, %826 : vector<2x8xf32>
    %828 = vector.extract_strided_slice %556 {offsets = [0, 1], sizes = [2, 1], strides = [1, 1]} : vector<2x2xf32> to vector<2x1xf32>
    %829 = vector.broadcast %828 : vector<2x1xf32> to vector<2x8xf32>
    %830 = vector.broadcast %638 : vector<1x8xf32> to vector<2x8xf32>
    %831 = arith.mulf %829, %830 : vector<2x8xf32>
    %832 = arith.addf %827, %831 : vector<2x8xf32>
    %833 = vector.extract_strided_slice %822 {offsets = [0, 0], sizes = [2, 1], strides = [1, 1]} : vector<2x2xf32> to vector<2x1xf32>
    %834 = vector.broadcast %833 : vector<2x1xf32> to vector<2x8xf32>
    %835 = vector.broadcast %639 : vector<1x8xf32> to vector<2x8xf32>
    %836 = arith.mulf %834, %835 : vector<2x8xf32>
    %837 = arith.addf %832, %836 : vector<2x8xf32>
    %838 = vector.extract_strided_slice %822 {offsets = [0, 1], sizes = [2, 1], strides = [1, 1]} : vector<2x2xf32> to vector<2x1xf32>
    %839 = vector.broadcast %838 : vector<2x1xf32> to vector<2x8xf32>
    %840 = vector.broadcast %640 : vector<1x8xf32> to vector<2x8xf32>
    %841 = arith.mulf %839, %840 : vector<2x8xf32>
    %842 = arith.addf %837, %841 : vector<2x8xf32>
    %843 = arith.mulf %842, %8 : vector<2x8xf32>
    %844 = math.tanh %843 : vector<2x8xf32>
    %cst_92 = arith.constant 1.000000e+00 : f32
    %845 = vector.broadcast %cst_92 : f32 to vector<2x8xf32>
    %846 = arith.addf %844, %845 : vector<2x8xf32>
    %cst_93 = arith.constant 5.000000e-01 : f32
    %847 = vector.broadcast %cst_93 : f32 to vector<2x8xf32>
    %848 = arith.mulf %847, %846 : vector<2x8xf32>
    %849 = arith.select %5, %844, %848 : vector<2x8xi1>, vector<2x8xf32>
    %850 = vector.extract_strided_slice %849 {offsets = [0, 0], sizes = [2, 2], strides = [1, 1]} : vector<2x8xf32> to vector<2x2xf32>
    %851 = vector.extract_strided_slice %849 {offsets = [0, 2], sizes = [2, 2], strides = [1, 1]} : vector<2x8xf32> to vector<2x2xf32>
    %852 = vector.extract_strided_slice %849 {offsets = [0, 4], sizes = [2, 2], strides = [1, 1]} : vector<2x8xf32> to vector<2x2xf32>
    %853 = vector.extract_strided_slice %849 {offsets = [0, 6], sizes = [2, 2], strides = [1, 1]} : vector<2x8xf32> to vector<2x2xf32>
    %854 = arith.mulf %851, %820 : vector<2x2xf32>
    %855 = arith.mulf %850, %852 : vector<2x2xf32>
    %856 = arith.addf %854, %855 : vector<2x2xf32>
    %857 = math.tanh %856 : vector<2x2xf32>
    %858 = arith.mulf %853, %857 : vector<2x2xf32>
    %859 = vector.extract_strided_slice %592 {offsets = [0, 0], sizes = [2, 1], strides = [1, 1]} : vector<2x2xf32> to vector<2x1xf32>
    %860 = vector.broadcast %859 : vector<2x1xf32> to vector<2x8xf32>
    %861 = vector.broadcast %637 : vector<1x8xf32> to vector<2x8xf32>
    %862 = arith.mulf %860, %861 : vector<2x8xf32>
    %863 = arith.addf %636, %862 : vector<2x8xf32>
    %864 = vector.extract_strided_slice %592 {offsets = [0, 1], sizes = [2, 1], strides = [1, 1]} : vector<2x2xf32> to vector<2x1xf32>
    %865 = vector.broadcast %864 : vector<2x1xf32> to vector<2x8xf32>
    %866 = vector.broadcast %638 : vector<1x8xf32> to vector<2x8xf32>
    %867 = arith.mulf %865, %866 : vector<2x8xf32>
    %868 = arith.addf %863, %867 : vector<2x8xf32>
    %869 = vector.extract_strided_slice %858 {offsets = [0, 0], sizes = [2, 1], strides = [1, 1]} : vector<2x2xf32> to vector<2x1xf32>
    %870 = vector.broadcast %869 : vector<2x1xf32> to vector<2x8xf32>
    %871 = vector.broadcast %639 : vector<1x8xf32> to vector<2x8xf32>
    %872 = arith.mulf %870, %871 : vector<2x8xf32>
    %873 = arith.addf %868, %872 : vector<2x8xf32>
    %874 = vector.extract_strided_slice %858 {offsets = [0, 1], sizes = [2, 1], strides = [1, 1]} : vector<2x2xf32> to vector<2x1xf32>
    %875 = vector.broadcast %874 : vector<2x1xf32> to vector<2x8xf32>
    %876 = vector.broadcast %640 : vector<1x8xf32> to vector<2x8xf32>
    %877 = arith.mulf %875, %876 : vector<2x8xf32>
    %878 = arith.addf %873, %877 : vector<2x8xf32>
    %879 = arith.mulf %878, %8 : vector<2x8xf32>
    %880 = math.tanh %879 : vector<2x8xf32>
    %cst_94 = arith.constant 1.000000e+00 : f32
    %881 = vector.broadcast %cst_94 : f32 to vector<2x8xf32>
    %882 = arith.addf %880, %881 : vector<2x8xf32>
    %cst_95 = arith.constant 5.000000e-01 : f32
    %883 = vector.broadcast %cst_95 : f32 to vector<2x8xf32>
    %884 = arith.mulf %883, %882 : vector<2x8xf32>
    %885 = arith.select %5, %880, %884 : vector<2x8xi1>, vector<2x8xf32>
    %886 = vector.extract_strided_slice %885 {offsets = [0, 0], sizes = [2, 2], strides = [1, 1]} : vector<2x8xf32> to vector<2x2xf32>
    %887 = vector.extract_strided_slice %885 {offsets = [0, 2], sizes = [2, 2], strides = [1, 1]} : vector<2x8xf32> to vector<2x2xf32>
    %888 = vector.extract_strided_slice %885 {offsets = [0, 4], sizes = [2, 2], strides = [1, 1]} : vector<2x8xf32> to vector<2x2xf32>
    %889 = vector.extract_strided_slice %885 {offsets = [0, 6], sizes = [2, 2], strides = [1, 1]} : vector<2x8xf32> to vector<2x2xf32>
    %890 = arith.mulf %887, %856 : vector<2x2xf32>
    %891 = arith.mulf %886, %888 : vector<2x2xf32>
    %892 = arith.addf %890, %891 : vector<2x2xf32>
    %893 = math.tanh %892 : vector<2x2xf32>
    %894 = arith.mulf %889, %893 : vector<2x2xf32>
    %895 = vector.extract_strided_slice %628 {offsets = [0, 0], sizes = [2, 1], strides = [1, 1]} : vector<2x2xf32> to vector<2x1xf32>
    %896 = vector.broadcast %895 : vector<2x1xf32> to vector<2x8xf32>
    %897 = vector.broadcast %637 : vector<1x8xf32> to vector<2x8xf32>
    %898 = arith.mulf %896, %897 : vector<2x8xf32>
    %899 = arith.addf %636, %898 : vector<2x8xf32>
    %900 = vector.extract_strided_slice %628 {offsets = [0, 1], sizes = [2, 1], strides = [1, 1]} : vector<2x2xf32> to vector<2x1xf32>
    %901 = vector.broadcast %900 : vector<2x1xf32> to vector<2x8xf32>
    %902 = vector.broadcast %638 : vector<1x8xf32> to vector<2x8xf32>
    %903 = arith.mulf %901, %902 : vector<2x8xf32>
    %904 = arith.addf %899, %903 : vector<2x8xf32>
    %905 = vector.extract_strided_slice %894 {offsets = [0, 0], sizes = [2, 1], strides = [1, 1]} : vector<2x2xf32> to vector<2x1xf32>
    %906 = vector.broadcast %905 : vector<2x1xf32> to vector<2x8xf32>
    %907 = vector.broadcast %639 : vector<1x8xf32> to vector<2x8xf32>
    %908 = arith.mulf %906, %907 : vector<2x8xf32>
    %909 = arith.addf %904, %908 : vector<2x8xf32>
    %910 = vector.extract_strided_slice %894 {offsets = [0, 1], sizes = [2, 1], strides = [1, 1]} : vector<2x2xf32> to vector<2x1xf32>
    %911 = vector.broadcast %910 : vector<2x1xf32> to vector<2x8xf32>
    %912 = vector.broadcast %640 : vector<1x8xf32> to vector<2x8xf32>
    %913 = arith.mulf %911, %912 : vector<2x8xf32>
    %914 = arith.addf %909, %913 : vector<2x8xf32>
    %915 = arith.mulf %914, %8 : vector<2x8xf32>
    %916 = math.tanh %915 : vector<2x8xf32>
    %cst_96 = arith.constant 1.000000e+00 : f32
    %917 = vector.broadcast %cst_96 : f32 to vector<2x8xf32>
    %918 = arith.addf %916, %917 : vector<2x8xf32>
    %cst_97 = arith.constant 5.000000e-01 : f32
    %919 = vector.broadcast %cst_97 : f32 to vector<2x8xf32>
    %920 = arith.mulf %919, %918 : vector<2x8xf32>
    %921 = arith.select %5, %916, %920 : vector<2x8xi1>, vector<2x8xf32>
    %922 = vector.extract_strided_slice %921 {offsets = [0, 0], sizes = [2, 2], strides = [1, 1]} : vector<2x8xf32> to vector<2x2xf32>
    %923 = vector.extract_strided_slice %921 {offsets = [0, 2], sizes = [2, 2], strides = [1, 1]} : vector<2x8xf32> to vector<2x2xf32>
    %924 = vector.extract_strided_slice %921 {offsets = [0, 4], sizes = [2, 2], strides = [1, 1]} : vector<2x8xf32> to vector<2x2xf32>
    %925 = vector.extract_strided_slice %921 {offsets = [0, 6], sizes = [2, 2], strides = [1, 1]} : vector<2x8xf32> to vector<2x2xf32>
    %926 = arith.mulf %923, %892 : vector<2x2xf32>
    %927 = arith.mulf %922, %924 : vector<2x2xf32>
    %928 = arith.addf %926, %927 : vector<2x2xf32>
    %929 = math.tanh %928 : vector<2x2xf32>
    %930 = arith.mulf %925, %929 : vector<2x2xf32>
    %931 = vector.shape_cast %678 : vector<2x2xf32> to vector<1x2x2xf32>
    %932 = vector.shape_cast %714 : vector<2x2xf32> to vector<1x2x2xf32>
    %933 = vector.shape_cast %750 : vector<2x2xf32> to vector<1x2x2xf32>
    %934 = vector.shape_cast %786 : vector<2x2xf32> to vector<1x2x2xf32>
    %935 = vector.shape_cast %822 : vector<2x2xf32> to vector<1x2x2xf32>
    %936 = vector.shape_cast %858 : vector<2x2xf32> to vector<1x2x2xf32>
    %937 = vector.shape_cast %894 : vector<2x2xf32> to vector<1x2x2xf32>
    %938 = vector.shape_cast %930 : vector<2x2xf32> to vector<1x2x2xf32>
    %939 = tpu.concatenate %931, %932, %933, %934, %935, %936, %937, %938 in 0 : vector<1x2x2xf32>, vector<1x2x2xf32>, vector<1x2x2xf32>, vector<1x2x2xf32>, vector<1x2x2xf32>, vector<1x2x2xf32>, vector<1x2x2xf32>, vector<1x2x2xf32> -> vector<8x2x2xf32>
    %c0_98 = arith.constant 0 : index
    %c0_99 = arith.constant 0 : index
    %c0_100 = arith.constant 0 : index
    %940 = vector.load %arg4[%c0_98, %c0_99, %c0_100] : memref<8x2x2xf32, #tpu.memory_space<vmem>>, vector<8x2x2xf32>
    tpu.vector_store %arg4[%c0_98, %c0_99, %c0_100], %939 {strides = array<i32>} : memref<8x2x2xf32, #tpu.memory_space<vmem>>, vector<8x2x2xf32>,
    return
  }
}

</mosaic_0001>

<llo_original>
// kernel: tpu_custom_call.1
$region0: #{tpu_custom_call.1}
  #allocation0 [shape = 'u32[]', space=smem, size = 0x4, offset = 0x4, fixed_abs, tag = 'smem constant byte address 0x4 - core index']
  #allocation1 [shape = 'u32[144,128]{1,0:T(1,128)}', space=vmem, size = 0x12000, scoped, tag = 'internal scratch']
  %s0 = inlined_call_operand.vmem [shape: f32[8,2,2], index: 0, kind: input, shape index: {}]
  %s1 = inlined_call_operand.vmem [shape: f32[3,2,8], index: 1, kind: input, shape index: {}]
  %s2 = inlined_call_operand.vmem [shape: f32[3,2,8], index: 2, kind: input, shape index: {}]
  %s3 = inlined_call_operand.vmem [shape: f32[3,1,8], index: 3, kind: input, shape index: {}]
  %s4 = inlined_call_operand.vmem [shape: f32[8,2,2], index: 4, kind: output, shape index: {}]
  %s5 = sld [smem:[#allocation0]]
  $region26: #{tpu_custom_call.1} parent=0
    _
  %s7 = ssub.s32 1, %s5
  %s8 = scalar_select 0, %s7, %s5
  // Predicated region
  $region2: #{tpu_custom_call.1} parent=0 // pred_check
    _
  $region3: #{tpu_custom_call.1} parent=0 // pred_check_branch
    %10 = sbr.rel (0) target = $region5
  $region4: #{tpu_custom_call.1} parent=0 // pred_region
    _
  $region5: #{tpu_custom_call.1} parent=0 // pred_fallthru
    _
  // Predicated region
  $region6: #{tpu_custom_call.1} parent=0 // pred_check
    _
  $region7: #{tpu_custom_call.1} parent=0 // pred_check_branch
    %12 = sbr.rel (0) target = $region9
  $region8: #{tpu_custom_call.1} parent=0 // pred_region
    _
  $region9: #{tpu_custom_call.1} parent=0 // pred_fallthru
    _
  // Predicated region
  $region10: #{tpu_custom_call.1} parent=0 // pred_check
    _
  $region11: #{tpu_custom_call.1} parent=0 // pred_check_branch
    %14 = sbr.rel (0) target = $region13
  $region12: #{tpu_custom_call.1} parent=0 // pred_region
    _
  $region13: #{tpu_custom_call.1} parent=0 // pred_fallthru
    _
  // Predicated region
  $region14: #{tpu_custom_call.1} parent=0 // pred_check
    _
  $region15: #{tpu_custom_call.1} parent=0 // pred_check_branch
    %16 = sbr.rel (0) target = $region17
  $region16: #{tpu_custom_call.1} parent=0 // pred_region
    _
  $region17: #{tpu_custom_call.1} parent=0 // pred_fallthru
    _
  %v17 = vlaneseq
  %v18 = vand.u32 %v17, 127
  %vm19 = vcmp.ge.s32.totalorder %v18, 4
  %vm20 = vcmp.lt.s32.totalorder %v18, 6
  %vm21 = vmand %vm19, %vm20
  %v22 = vsel %vm21, 1.0, 0.5
  %v23 = vld [vmem:[%s0] sm:$0x3]
  %s24 = scalar_lea.vmem %s0, 2
  %v25 = vld [vmem:[%s24] sm:$0x3]
  %s26 = scalar_lea.vmem %s0, 4
  %v27 = vld [vmem:[%s26] sm:$0x3]
  %s28 = scalar_lea.vmem %s0, 6
  %v29 = vld [vmem:[%s28] sm:$0x3]
  %s30 = scalar_lea.vmem %s0, 8
  %v31 = vld [vmem:[%s30] sm:$0x3]
  %s32 = scalar_lea.vmem %s0, 10
  %v33 = vld [vmem:[%s32] sm:$0x3]
  %s34 = scalar_lea.vmem %s0, 12
  %v35 = vld [vmem:[%s34] sm:$0x3]
  %s36 = scalar_lea.vmem %s0, 14
  %v37 = vld [vmem:[%s36] sm:$0x3]
  %v38 = vld [vmem:[%s1] sm:$0x3]
  %v39 = vld [vmem:[%s2] sm:$0x3]
  %v40 = vld [vmem:[%s3] sm:$0x1]
  %v42 = vlaneseq
  %v43 = vshrl.u32 %v42, 7
  %v44 = vsub.s32 0, %v43
  %v45 = vrot.slane %v40, %v44
  %48 = vset.pattern.permute.xlu0 0
  %49 = vperm.xlu0 %48, %v23
  %v50 = vpop.permute.xlu0 %49
  %v52 = vlaneseq
  %v53 = vshrl.u32 %v52, 7
  %v54 = vsub.s32 0, %v53
  %v55 = vrot.slane %v38, %v54
  %v56 = vmul.f32 %v50, %v55
  %v57 = vadd.f32 %v45, %v56
  %58 = vset.pattern.permute.xlu0 1
  %59 = vperm.xlu0 %58, %v23
  %v60 = vpop.permute.xlu0 %59
  %v62 = vlaneseq
  %v63 = vshrl.u32 %v62, 7
  %v64 = vsub.s32 1, %v63
  %v65 = vrot.slane %v38, %v64
  %v66 = vmul.f32 %v60, %v65
  %v67 = vadd.f32 %v57, %v66
  %v68 = vlaneseq
  %v69 = vshrl.u32 %v68, 7
  %v70 = vsub.s32 0, %v69
  %v71 = vrot.slane %v39, %v70
  %v72 = vmul.f32 %v71, 0.0
  %v73 = vadd.f32 %v67, %v72
  %v74 = vlaneseq
  %v75 = vshrl.u32 %v74, 7
  %v76 = vsub.s32 1, %v75
  %v77 = vrot.slane %v39, %v76
  %v78 = vmul.f32 %v77, 0.0
  %v79 = vadd.f32 %v73, %v78
  %v80 = vmul.f32 %v79, %v22
  %v81 = vtanh.pop %v80
  %v82 = vadd.f32 %v81, 1.0
  %v83 = vmul.f32 %v82, 0.5
  %v84 = vsel %vm21, %v81, %v83
  %v85 = vmul.f32 %v84, 0.0
  %87 = vrot.lane.b32.xlu0 %v84, 124
  %v88 = vpop.permute.xlu0 %87
  %v90 = vmul.f32 %v84, %v88
  %92 = vrot.lane.b32.xlu0 %v90, 2
  %v93 = vpop.permute.xlu0 %92
  %v95 = vadd.f32 %v85, %v93
  %v96 = vtanh.pop %v95
  %98 = vrot.lane.b32.xlu0 %v96, 4
  %v99 = vpop.permute.xlu0 %98
  %v101 = vmul.f32 %v84, %v99
  %103 = vset.pattern.permute.xlu0 0
  %104 = vperm.xlu0 %103, %v25
  %v105 = vpop.permute.xlu0 %104
  %v107 = vmul.f32 %v105, %v55
  %v108 = vadd.f32 %v45, %v107
  %109 = vset.pattern.permute.xlu0 1
  %110 = vperm.xlu0 %109, %v25
  %v111 = vpop.permute.xlu0 %110
  %v113 = vmul.f32 %v111, %v65
  %v114 = vadd.f32 %v108, %v113
  %116 = vset.pattern.permute.xlu0 6
  %117 = vperm.xlu0 %116, %v101
  %v118 = vpop.permute.xlu0 %117
  %v120 = vmul.f32 %v118, %v71
  %v121 = vadd.f32 %v114, %v120
  %122 = vset.pattern.permute.xlu0 7
  %123 = vperm.xlu0 %122, %v101
  %v124 = vpop.permute.xlu0 %123
  %v126 = vmul.f32 %v124, %v77
  %v127 = vadd.f32 %v121, %v126
  %v128 = vmul.f32 %v127, %v22
  %v129 = vtanh.pop %v128
  %v130 = vadd.f32 %v129, 1.0
  %v131 = vmul.f32 %v130, 0.5
  %v132 = vsel %vm21, %v129, %v131
  %v133 = vmul.f32 %v132, %v95
  %135 = vrot.lane.b32.xlu0 %v132, 124
  %v136 = vpop.permute.xlu0 %135
  %v138 = vmul.f32 %v132, %v136
  %140 = vrot.lane.b32.xlu0 %v138, 2
  %v141 = vpop.permute.xlu0 %140
  %v143 = vadd.f32 %v133, %v141
  %v144 = vtanh.pop %v143
  %146 = vrot.lane.b32.xlu0 %v144, 4
  %v147 = vpop.permute.xlu0 %146
  %v149 = vmul.f32 %v132, %v147
  %151 = vset.pattern.permute.xlu0 0
  %152 = vperm.xlu0 %151, %v27
  %v153 = vpop.permute.xlu0 %152
  %v155 = vmul.f32 %v153, %v55
  %v156 = vadd.f32 %v45, %v155
  %157 = vset.pattern.permute.xlu0 1
  %158 = vperm.xlu0 %157, %v27
  %v159 = vpop.permute.xlu0 %158
  %v161 = vmul.f32 %v159, %v65
  %v162 = vadd.f32 %v156, %v161
  %164 = vset.pattern.permute.xlu0 6
  %165 = vperm.xlu0 %164, %v149
  %v166 = vpop.permute.xlu0 %165
  %v168 = vmul.f32 %v166, %v71
  %v169 = vadd.f32 %v162, %v168
  %170 = vset.pattern.permute.xlu0 7
  %171 = vperm.xlu0 %170, %v149
  %v172 = vpop.permute.xlu0 %171
  %v174 = vmul.f32 %v172, %v77
  %v175 = vadd.f32 %v169, %v174
  %v176 = vmul.f32 %v175, %v22
  %v177 = vtanh.pop %v176
  %v178 = vadd.f32 %v177, 1.0
  %v179 = vmul.f32 %v178, 0.5
  %v180 = vsel %vm21, %v177, %v179
  %v181 = vmul.f32 %v180, %v143
  %183 = vrot.lane.b32.xlu0 %v180, 124
  %v184 = vpop.permute.xlu0 %183
  %v186 = vmul.f32 %v180, %v184
  %188 = vrot.lane.b32.xlu0 %v186, 2
  %v189 = vpop.permute.xlu0 %188
  %v191 = vadd.f32 %v181, %v189
  %v192 = vtanh.pop %v191
  %194 = vrot.lane.b32.xlu0 %v192, 4
  %v195 = vpop.permute.xlu0 %194
  %v197 = vmul.f32 %v180, %v195
  %199 = vset.pattern.permute.xlu0 0
  %200 = vperm.xlu0 %199, %v29
  %v201 = vpop.permute.xlu0 %200
  %v203 = vmul.f32 %v201, %v55
  %v204 = vadd.f32 %v45, %v203
  %205 = vset.pattern.permute.xlu0 1
  %206 = vperm.xlu0 %205, %v29
  %v207 = vpop.permute.xlu0 %206
  %v209 = vmul.f32 %v207, %v65
  %v210 = vadd.f32 %v204, %v209
  %212 = vset.pattern.permute.xlu0 6
  %213 = vperm.xlu0 %212, %v197
  %v214 = vpop.permute.xlu0 %213
  %v216 = vmul.f32 %v214, %v71
  %v217 = vadd.f32 %v210, %v216
  %218 = vset.pattern.permute.xlu0 7
  %219 = vperm.xlu0 %218, %v197
  %v220 = vpop.permute.xlu0 %219
  %v222 = vmul.f32 %v220, %v77
  %v223 = vadd.f32 %v217, %v222
  %v224 = vmul.f32 %v223, %v22
  %v225 = vtanh.pop %v224
  %v226 = vadd.f32 %v225, 1.0
  %v227 = vmul.f32 %v226, 0.5
  %v228 = vsel %vm21, %v225, %v227
  %v229 = vmul.f32 %v228, %v191
  %231 = vrot.lane.b32.xlu0 %v228, 124
  %v232 = vpop.permute.xlu0 %231
  %v234 = vmul.f32 %v228, %v232
  %236 = vrot.lane.b32.xlu0 %v234, 2
  %v237 = vpop.permute.xlu0 %236
  %v239 = vadd.f32 %v229, %v237
  %v240 = vtanh.pop %v239
  %242 = vrot.lane.b32.xlu0 %v240, 4
  %v243 = vpop.permute.xlu0 %242
  %v245 = vmul.f32 %v228, %v243
  %247 = vset.pattern.permute.xlu0 0
  %248 = vperm.xlu0 %247, %v31
  %v249 = vpop.permute.xlu0 %248
  %v251 = vmul.f32 %v249, %v55
  %v252 = vadd.f32 %v45, %v251
  %253 = vset.pattern.permute.xlu0 1
  %254 = vperm.xlu0 %253, %v31
  %v255 = vpop.permute.xlu0 %254
  %v257 = vmul.f32 %v255, %v65
  %v258 = vadd.f32 %v252, %v257
  %260 = vset.pattern.permute.xlu0 6
  %261 = vperm.xlu0 %260, %v245
  %v262 = vpop.permute.xlu0 %261
  %v264 = vmul.f32 %v262, %v71
  %v265 = vadd.f32 %v258, %v264
  %266 = vset.pattern.permute.xlu0 7
  %267 = vperm.xlu0 %266, %v245
  %v268 = vpop.permute.xlu0 %267
  %v270 = vmul.f32 %v268, %v77
  %v271 = vadd.f32 %v265, %v270
  %v272 = vmul.f32 %v271, %v22
  %v273 = vtanh.pop %v272
  %v274 = vadd.f32 %v273, 1.0
  %v275 = vmul.f32 %v274, 0.5
  %v276 = vsel %vm21, %v273, %v275
  %v277 = vmul.f32 %v276, %v239
  %279 = vrot.lane.b32.xlu0 %v276, 124
  %v280 = vpop.permute.xlu0 %279
  %v282 = vmul.f32 %v276, %v280
  %284 = vrot.lane.b32.xlu0 %v282, 2
  %v285 = vpop.permute.xlu0 %284
  %v287 = vadd.f32 %v277, %v285
  %v288 = vtanh.pop %v287
  %290 = vrot.lane.b32.xlu0 %v288, 4
  %v291 = vpop.permute.xlu0 %290
  %v293 = vmul.f32 %v276, %v291
  %295 = vset.pattern.permute.xlu0 0
  %296 = vperm.xlu0 %295, %v33
  %v297 = vpop.permute.xlu0 %296
  %v299 = vmul.f32 %v297, %v55
  %v300 = vadd.f32 %v45, %v299
  %301 = vset.pattern.permute.xlu0 1
  %302 = vperm.xlu0 %301, %v33
  %v303 = vpop.permute.xlu0 %302
  %v305 = vmul.f32 %v303, %v65
  %v306 = vadd.f32 %v300, %v305
  %308 = vset.pattern.permute.xlu0 6
  %309 = vperm.xlu0 %308, %v293
  %v310 = vpop.permute.xlu0 %309
  %v312 = vmul.f32 %v310, %v71
  %v313 = vadd.f32 %v306, %v312
  %314 = vset.pattern.permute.xlu0 7
  %315 = vperm.xlu0 %314, %v293
  %v316 = vpop.permute.xlu0 %315
  %v318 = vmul.f32 %v316, %v77
  %v319 = vadd.f32 %v313, %v318
  %v320 = vmul.f32 %v319, %v22
  %v321 = vtanh.pop %v320
  %v322 = vadd.f32 %v321, 1.0
  %v323 = vmul.f32 %v322, 0.5
  %v324 = vsel %vm21, %v321, %v323
  %v325 = vmul.f32 %v324, %v287
  %327 = vrot.lane.b32.xlu0 %v324, 124
  %v328 = vpop.permute.xlu0 %327
  %v330 = vmul.f32 %v324, %v328
  %332 = vrot.lane.b32.xlu0 %v330, 2
  %v333 = vpop.permute.xlu0 %332
  %v335 = vadd.f32 %v325, %v333
  %v336 = vtanh.pop %v335
  %338 = vrot.lane.b32.xlu0 %v336, 4
  %v339 = vpop.permute.xlu0 %338
  %v341 = vmul.f32 %v324, %v339
  %343 = vset.pattern.permute.xlu0 0
  %344 = vperm.xlu0 %343, %v35
  %v345 = vpop.permute.xlu0 %344
  %v347 = vmul.f32 %v345, %v55
  %v348 = vadd.f32 %v45, %v347
  %349 = vset.pattern.permute.xlu0 1
  %350 = vperm.xlu0 %349, %v35
  %v351 = vpop.permute.xlu0 %350
  %v353 = vmul.f32 %v351, %v65
  %v354 = vadd.f32 %v348, %v353
  %356 = vset.pattern.permute.xlu0 6
  %357 = vperm.xlu0 %356, %v341
  %v358 = vpop.permute.xlu0 %357
  %v360 = vmul.f32 %v358, %v71
  %v361 = vadd.f32 %v354, %v360
  %362 = vset.pattern.permute.xlu0 7
  %363 = vperm.xlu0 %362, %v341
  %v364 = vpop.permute.xlu0 %363
  %v366 = vmul.f32 %v364, %v77
  %v367 = vadd.f32 %v361, %v366
  %v368 = vmul.f32 %v367, %v22
  %v369 = vtanh.pop %v368
  %v370 = vadd.f32 %v369, 1.0
  %v371 = vmul.f32 %v370, 0.5
  %v372 = vsel %vm21, %v369, %v371
  %v373 = vmul.f32 %v372, %v335
  %375 = vrot.lane.b32.xlu0 %v372, 124
  %v376 = vpop.permute.xlu0 %375
  %v378 = vmul.f32 %v372, %v376
  %380 = vrot.lane.b32.xlu0 %v378, 2
  %v381 = vpop.permute.xlu0 %380
  %v383 = vadd.f32 %v373, %v381
  %v384 = vtanh.pop %v383
  %386 = vrot.lane.b32.xlu0 %v384, 4
  %v387 = vpop.permute.xlu0 %386
  %v389 = vmul.f32 %v372, %v387
  %391 = vset.pattern.permute.xlu0 0
  %392 = vperm.xlu0 %391, %v37
  %v393 = vpop.permute.xlu0 %392
  %v395 = vmul.f32 %v393, %v55
  %v396 = vadd.f32 %v45, %v395
  %397 = vset.pattern.permute.xlu0 1
  %398 = vperm.xlu0 %397, %v37
  %v399 = vpop.permute.xlu0 %398
  %v401 = vmul.f32 %v399, %v65
  %v402 = vadd.f32 %v396, %v401
  %404 = vset.pattern.permute.xlu0 6
  %405 = vperm.xlu0 %404, %v389
  %v406 = vpop.permute.xlu0 %405
  %v408 = vmul.f32 %v406, %v71
  %v409 = vadd.f32 %v402, %v408
  %410 = vset.pattern.permute.xlu0 7
  %411 = vperm.xlu0 %410, %v389
  %v412 = vpop.permute.xlu0 %411
  %v414 = vmul.f32 %v412, %v77
  %v415 = vadd.f32 %v409, %v414
  %v416 = vmul.f32 %v415, %v22
  %v417 = vtanh.pop %v416
  %v418 = vadd.f32 %v417, 1.0
  %v419 = vmul.f32 %v418, 0.5
  %v420 = vsel %vm21, %v417, %v419
  %v421 = vmul.f32 %v420, %v383
  %423 = vrot.lane.b32.xlu0 %v420, 124
  %v424 = vpop.permute.xlu0 %423
  %v426 = vmul.f32 %v420, %v424
  %428 = vrot.lane.b32.xlu0 %v426, 2
  %v429 = vpop.permute.xlu0 %428
  %v431 = vadd.f32 %v421, %v429
  %v432 = vtanh.pop %v431
  %434 = vrot.lane.b32.xlu0 %v432, 4
  %v435 = vpop.permute.xlu0 %434
  %v437 = vmul.f32 %v420, %v435
  %s438 = scalar_lea.vmem %s1, 2
  %v439 = vld [vmem:[%s438] sm:$0x3]
  %s440 = scalar_lea.vmem %s2, 2
  %v441 = vld [vmem:[%s440] sm:$0x3]
  %s442 = scalar_lea.vmem %s3, 1
  %v443 = vld [vmem:[%s442] sm:$0x1]
  %v445 = vlaneseq
  %v446 = vshrl.u32 %v445, 7
  %v447 = vsub.s32 0, %v446
  %v448 = vrot.slane %v443, %v447
  %v450 = vlaneseq
  %v451 = vshrl.u32 %v450, 7
  %v452 = vsub.s32 0, %v451
  %v453 = vrot.slane %v439, %v452
  %v454 = vmul.f32 %v118, %v453
  %v455 = vadd.f32 %v448, %v454
  %v456 = vlaneseq
  %v457 = vshrl.u32 %v456, 7
  %v458 = vsub.s32 1, %v457
  %v459 = vrot.slane %v439, %v458
  %v460 = vmul.f32 %v124, %v459
  %v461 = vadd.f32 %v455, %v460
  %v462 = vlaneseq
  %v463 = vshrl.u32 %v462, 7
  %v464 = vsub.s32 0, %v463
  %v465 = vrot.slane %v441, %v464
  %v466 = vmul.f32 %v465, 0.0
  %v467 = vadd.f32 %v461, %v466
  %v468 = vlaneseq
  %v469 = vshrl.u32 %v468, 7
  %v470 = vsub.s32 1, %v469
  %v471 = vrot.slane %v441, %v470
  %v472 = vmul.f32 %v471, 0.0
  %v473 = vadd.f32 %v467, %v472
  %v474 = vmul.f32 %v473, %v22
  %v475 = vtanh.pop %v474
  %v476 = vadd.f32 %v475, 1.0
  %v477 = vmul.f32 %v476, 0.5
  %v478 = vsel %vm21, %v475, %v477
  %v479 = vmul.f32 %v478, 0.0
  %481 = vrot.lane.b32.xlu0 %v478, 124
  %v482 = vpop.permute.xlu0 %481
  %v484 = vmul.f32 %v478, %v482
  %486 = vrot.lane.b32.xlu0 %v484, 2
  %v487 = vpop.permute.xlu0 %486
  %v489 = vadd.f32 %v479, %v487
  %v490 = vtanh.pop %v489
  %492 = vrot.lane.b32.xlu0 %v490, 4
  %v493 = vpop.permute.xlu0 %492
  %v495 = vmul.f32 %v478, %v493
  %v496 = vmul.f32 %v166, %v453
  %v497 = vadd.f32 %v448, %v496
  %v498 = vmul.f32 %v172, %v459
  %v499 = vadd.f32 %v497, %v498
  %501 = vset.pattern.permute.xlu0 6
  %502 = vperm.xlu0 %501, %v495
  %v503 = vpop.permute.xlu0 %502
  %v505 = vmul.f32 %v503, %v465
  %v506 = vadd.f32 %v499, %v505
  %507 = vset.pattern.permute.xlu0 7
  %508 = vperm.xlu0 %507, %v495
  %v509 = vpop.permute.xlu0 %508
  %v511 = vmul.f32 %v509, %v471
  %v512 = vadd.f32 %v506, %v511
  %v513 = vmul.f32 %v512, %v22
  %v514 = vtanh.pop %v513
  %v515 = vadd.f32 %v514, 1.0
  %v516 = vmul.f32 %v515, 0.5
  %v517 = vsel %vm21, %v514, %v516
  %v518 = vmul.f32 %v517, %v489
  %520 = vrot.lane.b32.xlu0 %v517, 124
  %v521 = vpop.permute.xlu0 %520
  %v523 = vmul.f32 %v517, %v521
  %525 = vrot.lane.b32.xlu0 %v523, 2
  %v526 = vpop.permute.xlu0 %525
  %v528 = vadd.f32 %v518, %v526
  %v529 = vtanh.pop %v528
  %531 = vrot.lane.b32.xlu0 %v529, 4
  %v532 = vpop.permute.xlu0 %531
  %v534 = vmul.f32 %v517, %v532
  %v535 = vmul.f32 %v214, %v453
  %v536 = vadd.f32 %v448, %v535
  %v537 = vmul.f32 %v220, %v459
  %v538 = vadd.f32 %v536, %v537
  %540 = vset.pattern.permute.xlu0 6
  %541 = vperm.xlu0 %540, %v534
  %v542 = vpop.permute.xlu0 %541
  %v544 = vmul.f32 %v542, %v465
  %v545 = vadd.f32 %v538, %v544
  %546 = vset.pattern.permute.xlu0 7
  %547 = vperm.xlu0 %546, %v534
  %v548 = vpop.permute.xlu0 %547
  %v550 = vmul.f32 %v548, %v471
  %v551 = vadd.f32 %v545, %v550
  %v552 = vmul.f32 %v551, %v22
  %v553 = vtanh.pop %v552
  %v554 = vadd.f32 %v553, 1.0
  %v555 = vmul.f32 %v554, 0.5
  %v556 = vsel %vm21, %v553, %v555
  %v557 = vmul.f32 %v556, %v528
  %559 = vrot.lane.b32.xlu0 %v556, 124
  %v560 = vpop.permute.xlu0 %559
  %v562 = vmul.f32 %v556, %v560
  %564 = vrot.lane.b32.xlu0 %v562, 2
  %v565 = vpop.permute.xlu0 %564
  %v567 = vadd.f32 %v557, %v565
  %v568 = vtanh.pop %v567
  %570 = vrot.lane.b32.xlu0 %v568, 4
  %v571 = vpop.permute.xlu0 %570
  %v573 = vmul.f32 %v556, %v571
  %v574 = vmul.f32 %v262, %v453
  %v575 = vadd.f32 %v448, %v574
  %v576 = vmul.f32 %v268, %v459
  %v577 = vadd.f32 %v575, %v576
  %579 = vset.pattern.permute.xlu0 6
  %580 = vperm.xlu0 %579, %v573
  %v581 = vpop.permute.xlu0 %580
  %v583 = vmul.f32 %v581, %v465
  %v584 = vadd.f32 %v577, %v583
  %585 = vset.pattern.permute.xlu0 7
  %586 = vperm.xlu0 %585, %v573
  %v587 = vpop.permute.xlu0 %586
  %v589 = vmul.f32 %v587, %v471
  %v590 = vadd.f32 %v584, %v589
  %v591 = vmul.f32 %v590, %v22
  %v592 = vtanh.pop %v591
  %v593 = vadd.f32 %v592, 1.0
  %v594 = vmul.f32 %v593, 0.5
  %v595 = vsel %vm21, %v592, %v594
  %v596 = vmul.f32 %v595, %v567
  %598 = vrot.lane.b32.xlu0 %v595, 124
  %v599 = vpop.permute.xlu0 %598
  %v601 = vmul.f32 %v595, %v599
  %603 = vrot.lane.b32.xlu0 %v601, 2
  %v604 = vpop.permute.xlu0 %603
  %v606 = vadd.f32 %v596, %v604
  %v607 = vtanh.pop %v606
  %609 = vrot.lane.b32.xlu0 %v607, 4
  %v610 = vpop.permute.xlu0 %609
  %v612 = vmul.f32 %v595, %v610
  %v613 = vmul.f32 %v310, %v453
  %v614 = vadd.f32 %v448, %v613
  %v615 = vmul.f32 %v316, %v459
  %v616 = vadd.f32 %v614, %v615
  %618 = vset.pattern.permute.xlu0 6
  %619 = vperm.xlu0 %618, %v612
  %v620 = vpop.permute.xlu0 %619
  %v622 = vmul.f32 %v620, %v465
  %v623 = vadd.f32 %v616, %v622
  %624 = vset.pattern.permute.xlu0 7
  %625 = vperm.xlu0 %624, %v612
  %v626 = vpop.permute.xlu0 %625
  %v628 = vmul.f32 %v626, %v471
  %v629 = vadd.f32 %v623, %v628
  %v630 = vmul.f32 %v629, %v22
  %v631 = vtanh.pop %v630
  %v632 = vadd.f32 %v631, 1.0
  %v633 = vmul.f32 %v632, 0.5
  %v634 = vsel %vm21, %v631, %v633
  %v635 = vmul.f32 %v634, %v606
  %637 = vrot.lane.b32.xlu0 %v634, 124
  %v638 = vpop.permute.xlu0 %637
  %v640 = vmul.f32 %v634, %v638
  %642 = vrot.lane.b32.xlu0 %v640, 2
  %v643 = vpop.permute.xlu0 %642
  %v645 = vadd.f32 %v635, %v643
  %v646 = vtanh.pop %v645
  %648 = vrot.lane.b32.xlu0 %v646, 4
  %v649 = vpop.permute.xlu0 %648
  %v651 = vmul.f32 %v634, %v649
  %v652 = vmul.f32 %v358, %v453
  %v653 = vadd.f32 %v448, %v652
  %v654 = vmul.f32 %v364, %v459
  %v655 = vadd.f32 %v653, %v654
  %657 = vset.pattern.permute.xlu0 6
  %658 = vperm.xlu0 %657, %v651
  %v659 = vpop.permute.xlu0 %658
  %v661 = vmul.f32 %v659, %v465
  %v662 = vadd.f32 %v655, %v661
  %663 = vset.pattern.permute.xlu0 7
  %664 = vperm.xlu0 %663, %v651
  %v665 = vpop.permute.xlu0 %664
  %v667 = vmul.f32 %v665, %v471
  %v668 = vadd.f32 %v662, %v667
  %v669 = vmul.f32 %v668, %v22
  %v670 = vtanh.pop %v669
  %v671 = vadd.f32 %v670, 1.0
  %v672 = vmul.f32 %v671, 0.5
  %v673 = vsel %vm21, %v670, %v672
  %v674 = vmul.f32 %v673, %v645
  %676 = vrot.lane.b32.xlu0 %v673, 124
  %v677 = vpop.permute.xlu0 %676
  %v679 = vmul.f32 %v673, %v677
  %681 = vrot.lane.b32.xlu0 %v679, 2
  %v682 = vpop.permute.xlu0 %681
  %v684 = vadd.f32 %v674, %v682
  %v685 = vtanh.pop %v684
  %687 = vrot.lane.b32.xlu0 %v685, 4
  %v688 = vpop.permute.xlu0 %687
  %v690 = vmul.f32 %v673, %v688
  %v691 = vmul.f32 %v406, %v453
  %v692 = vadd.f32 %v448, %v691
  %v693 = vmul.f32 %v412, %v459
  %v694 = vadd.f32 %v692, %v693
  %696 = vset.pattern.permute.xlu0 6
  %697 = vperm.xlu0 %696, %v690
  %v698 = vpop.permute.xlu0 %697
  %v700 = vmul.f32 %v698, %v465
  %v701 = vadd.f32 %v694, %v700
  %702 = vset.pattern.permute.xlu0 7
  %703 = vperm.xlu0 %702, %v690
  %v704 = vpop.permute.xlu0 %703
  %v706 = vmul.f32 %v704, %v471
  %v707 = vadd.f32 %v701, %v706
  %v708 = vmul.f32 %v707, %v22
  %v709 = vtanh.pop %v708
  %v710 = vadd.f32 %v709, 1.0
  %v711 = vmul.f32 %v710, 0.5
  %v712 = vsel %vm21, %v709, %v711
  %v713 = vmul.f32 %v712, %v684
  %715 = vrot.lane.b32.xlu0 %v712, 124
  %v716 = vpop.permute.xlu0 %715
  %v718 = vmul.f32 %v712, %v716
  %720 = vrot.lane.b32.xlu0 %v718, 2
  %v721 = vpop.permute.xlu0 %720
  %v723 = vadd.f32 %v713, %v721
  %v724 = vtanh.pop %v723
  %726 = vrot.lane.b32.xlu0 %v724, 4
  %v727 = vpop.permute.xlu0 %726
  %v729 = vmul.f32 %v712, %v727
  %731 = vset.pattern.permute.xlu0 6
  %732 = vperm.xlu0 %731, %v437
  %v733 = vpop.permute.xlu0 %732
  %v735 = vmul.f32 %v733, %v453
  %v736 = vadd.f32 %v448, %v735
  %737 = vset.pattern.permute.xlu0 7
  %738 = vperm.xlu0 %737, %v437
  %v739 = vpop.permute.xlu0 %738
  %v741 = vmul.f32 %v739, %v459
  %v742 = vadd.f32 %v736, %v741
  %744 = vset.pattern.permute.xlu0 6
  %745 = vperm.xlu0 %744, %v729
  %v746 = vpop.permute.xlu0 %745
  %v748 = vmul.f32 %v746, %v465
  %v749 = vadd.f32 %v742, %v748
  %750 = vset.pattern.permute.xlu0 7
  %751 = vperm.xlu0 %750, %v729
  %v752 = vpop.permute.xlu0 %751
  %v754 = vmul.f32 %v752, %v471
  %v755 = vadd.f32 %v749, %v754
  %v756 = vmul.f32 %v755, %v22
  %v757 = vtanh.pop %v756
  %v758 = vadd.f32 %v757, 1.0
  %v759 = vmul.f32 %v758, 0.5
  %v760 = vsel %vm21, %v757, %v759
  %v761 = vmul.f32 %v760, %v723
  %763 = vrot.lane.b32.xlu0 %v760, 124
  %v764 = vpop.permute.xlu0 %763
  %v766 = vmul.f32 %v760, %v764
  %768 = vrot.lane.b32.xlu0 %v766, 2
  %v769 = vpop.permute.xlu0 %768
  %v771 = vadd.f32 %v761, %v769
  %v772 = vtanh.pop %v771
  %774 = vrot.lane.b32.xlu0 %v772, 4
  %v775 = vpop.permute.xlu0 %774
  %v777 = vmul.f32 %v760, %v775
  %s778 = scalar_lea.vmem %s1, 4
  %v779 = vld [vmem:[%s778] sm:$0x3]
  %s780 = scalar_lea.vmem %s2, 4
  %v781 = vld [vmem:[%s780] sm:$0x3]
  %s782 = scalar_lea.vmem %s3, 2
  %v783 = vld [vmem:[%s782] sm:$0x1]
  %v785 = vlaneseq
  %v786 = vshrl.u32 %v785, 7
  %v787 = vsub.s32 0, %v786
  %v788 = vrot.slane %v783, %v787
  %v790 = vlaneseq
  %v791 = vshrl.u32 %v790, 7
  %v792 = vsub.s32 0, %v791
  %v793 = vrot.slane %v779, %v792
  %v794 = vmul.f32 %v503, %v793
  %v795 = vadd.f32 %v788, %v794
  %v796 = vlaneseq
  %v797 = vshrl.u32 %v796, 7
  %v798 = vsub.s32 1, %v797
  %v799 = vrot.slane %v779, %v798
  %v800 = vmul.f32 %v509, %v799
  %v801 = vadd.f32 %v795, %v800
  %v802 = vlaneseq
  %v803 = vshrl.u32 %v802, 7
  %v804 = vsub.s32 0, %v803
  %v805 = vrot.slane %v781, %v804
  %v806 = vmul.f32 %v805, 0.0
  %v807 = vadd.f32 %v801, %v806
  %v808 = vlaneseq
  %v809 = vshrl.u32 %v808, 7
  %v810 = vsub.s32 1, %v809
  %v811 = vrot.slane %v781, %v810
  %v812 = vmul.f32 %v811, 0.0
  %v813 = vadd.f32 %v807, %v812
  %v814 = vmul.f32 %v813, %v22
  %v815 = vtanh.pop %v814
  %v816 = vadd.f32 %v815, 1.0
  %v817 = vmul.f32 %v816, 0.5
  %v818 = vsel %vm21, %v815, %v817
  %v819 = vmul.f32 %v818, 0.0
  %821 = vrot.lane.b32.xlu0 %v818, 124
  %v822 = vpop.permute.xlu0 %821
  %v824 = vmul.f32 %v818, %v822
  %826 = vrot.lane.b32.xlu0 %v824, 2
  %v827 = vpop.permute.xlu0 %826
  %v829 = vadd.f32 %v819, %v827
  %v830 = vtanh.pop %v829
  %832 = vrot.lane.b32.xlu0 %v830, 4
  %v833 = vpop.permute.xlu0 %832
  %v835 = vmul.f32 %v818, %v833
  %v836 = vmul.f32 %v542, %v793
  %v837 = vadd.f32 %v788, %v836
  %v838 = vmul.f32 %v548, %v799
  %v839 = vadd.f32 %v837, %v838
  %841 = vset.pattern.permute.xlu0 6
  %842 = vperm.xlu0 %841, %v835
  %v843 = vpop.permute.xlu0 %842
  %v845 = vmul.f32 %v843, %v805
  %v846 = vadd.f32 %v839, %v845
  %847 = vset.pattern.permute.xlu0 7
  %848 = vperm.xlu0 %847, %v835
  %v849 = vpop.permute.xlu0 %848
  %v851 = vmul.f32 %v849, %v811
  %v852 = vadd.f32 %v846, %v851
  %v853 = vmul.f32 %v852, %v22
  %v854 = vtanh.pop %v853
  %v855 = vadd.f32 %v854, 1.0
  %v856 = vmul.f32 %v855, 0.5
  %v857 = vsel %vm21, %v854, %v856
  %v858 = vmul.f32 %v857, %v829
  %860 = vrot.lane.b32.xlu0 %v857, 124
  %v861 = vpop.permute.xlu0 %860
  %v863 = vmul.f32 %v857, %v861
  %865 = vrot.lane.b32.xlu0 %v863, 2
  %v866 = vpop.permute.xlu0 %865
  %v868 = vadd.f32 %v858, %v866
  %v869 = vtanh.pop %v868
  %871 = vrot.lane.b32.xlu0 %v869, 4
  %v872 = vpop.permute.xlu0 %871
  %v874 = vmul.f32 %v857, %v872
  %v875 = vmul.f32 %v581, %v793
  %v876 = vadd.f32 %v788, %v875
  %v877 = vmul.f32 %v587, %v799
  %v878 = vadd.f32 %v876, %v877
  %880 = vset.pattern.permute.xlu0 6
  %881 = vperm.xlu0 %880, %v874
  %v882 = vpop.permute.xlu0 %881
  %v884 = vmul.f32 %v882, %v805
  %v885 = vadd.f32 %v878, %v884
  %886 = vset.pattern.permute.xlu0 7
  %887 = vperm.xlu0 %886, %v874
  %v888 = vpop.permute.xlu0 %887
  %v890 = vmul.f32 %v888, %v811
  %v891 = vadd.f32 %v885, %v890
  %v892 = vmul.f32 %v891, %v22
  %v893 = vtanh.pop %v892
  %v894 = vadd.f32 %v893, 1.0
  %v895 = vmul.f32 %v894, 0.5
  %v896 = vsel %vm21, %v893, %v895
  %v897 = vmul.f32 %v896, %v868
  %899 = vrot.lane.b32.xlu0 %v896, 124
  %v900 = vpop.permute.xlu0 %899
  %v902 = vmul.f32 %v896, %v900
  %904 = vrot.lane.b32.xlu0 %v902, 2
  %v905 = vpop.permute.xlu0 %904
  %v907 = vadd.f32 %v897, %v905
  %v908 = vtanh.pop %v907
  %910 = vrot.lane.b32.xlu0 %v908, 4
  %v911 = vpop.permute.xlu0 %910
  %v913 = vmul.f32 %v896, %v911
  %v914 = vmul.f32 %v620, %v793
  %v915 = vadd.f32 %v788, %v914
  %v916 = vmul.f32 %v626, %v799
  %v917 = vadd.f32 %v915, %v916
  %919 = vset.pattern.permute.xlu0 6
  %920 = vperm.xlu0 %919, %v913
  %v921 = vpop.permute.xlu0 %920
  %v923 = vmul.f32 %v921, %v805
  %v924 = vadd.f32 %v917, %v923
  %925 = vset.pattern.permute.xlu0 7
  %926 = vperm.xlu0 %925, %v913
  %v927 = vpop.permute.xlu0 %926
  %v929 = vmul.f32 %v927, %v811
  %v930 = vadd.f32 %v924, %v929
  %v931 = vmul.f32 %v930, %v22
  %v932 = vtanh.pop %v931
  %v933 = vadd.f32 %v932, 1.0
  %v934 = vmul.f32 %v933, 0.5
  %v935 = vsel %vm21, %v932, %v934
  %v936 = vmul.f32 %v935, %v907
  %938 = vrot.lane.b32.xlu0 %v935, 124
  %v939 = vpop.permute.xlu0 %938
  %v941 = vmul.f32 %v935, %v939
  %943 = vrot.lane.b32.xlu0 %v941, 2
  %v944 = vpop.permute.xlu0 %943
  %v946 = vadd.f32 %v936, %v944
  %v947 = vtanh.pop %v946
  %949 = vrot.lane.b32.xlu0 %v947, 4
  %v950 = vpop.permute.xlu0 %949
  %v952 = vmul.f32 %v935, %v950
  %v953 = vmul.f32 %v659, %v793
  %v954 = vadd.f32 %v788, %v953
  %v955 = vmul.f32 %v665, %v799
  %v956 = vadd.f32 %v954, %v955
  %958 = vset.pattern.permute.xlu0 6
  %959 = vperm.xlu0 %958, %v952
  %v960 = vpop.permute.xlu0 %959
  %v962 = vmul.f32 %v960, %v805
  %v963 = vadd.f32 %v956, %v962
  %964 = vset.pattern.permute.xlu0 7
  %965 = vperm.xlu0 %964, %v952
  %v966 = vpop.permute.xlu0 %965
  %v968 = vmul.f32 %v966, %v811
  %v969 = vadd.f32 %v963, %v968
  %v970 = vmul.f32 %v969, %v22
  %v971 = vtanh.pop %v970
  %v972 = vadd.f32 %v971, 1.0
  %v973 = vmul.f32 %v972, 0.5
  %v974 = vsel %vm21, %v971, %v973
  %v975 = vmul.f32 %v974, %v946
  %977 = vrot.lane.b32.xlu0 %v974, 124
  %v978 = vpop.permute.xlu0 %977
  %v980 = vmul.f32 %v974, %v978
  %982 = vrot.lane.b32.xlu0 %v980, 2
  %v983 = vpop.permute.xlu0 %982
  %v985 = vadd.f32 %v975, %v983
  %v986 = vtanh.pop %v985
  %988 = vrot.lane.b32.xlu0 %v986, 4
  %v989 = vpop.permute.xlu0 %988
  %v991 = vmul.f32 %v974, %v989
  %v992 = vmul.f32 %v698, %v793
  %v993 = vadd.f32 %v788, %v992
  %v994 = vmul.f32 %v704, %v799
  %v995 = vadd.f32 %v993, %v994
  %997 = vset.pattern.permute.xlu0 6
  %998 = vperm.xlu0 %997, %v991
  %v999 = vpop.permute.xlu0 %998
  %v1001 = vmul.f32 %v999, %v805
  %v1002 = vadd.f32 %v995, %v1001
  %1003 = vset.pattern.permute.xlu0 7
  %1004 = vperm.xlu0 %1003, %v991
  %v1005 = vpop.permute.xlu0 %1004
  %v1007 = vmul.f32 %v1005, %v811
  %v1008 = vadd.f32 %v1002, %v1007
  %v1009 = vmul.f32 %v1008, %v22
  %v1010 = vtanh.pop %v1009
  %v1011 = vadd.f32 %v1010, 1.0
  %v1012 = vmul.f32 %v1011, 0.5
  %v1013 = vsel %vm21, %v1010, %v1012
  %v1014 = vmul.f32 %v1013, %v985
  %1016 = vrot.lane.b32.xlu0 %v1013, 124
  %v1017 = vpop.permute.xlu0 %1016
  %v1019 = vmul.f32 %v1013, %v1017
  %1021 = vrot.lane.b32.xlu0 %v1019, 2
  %v1022 = vpop.permute.xlu0 %1021
  %v1024 = vadd.f32 %v1014, %v1022
  %v1025 = vtanh.pop %v1024
  %1027 = vrot.lane.b32.xlu0 %v1025, 4
  %v1028 = vpop.permute.xlu0 %1027
  %v1030 = vmul.f32 %v1013, %v1028
  %v1031 = vmul.f32 %v746, %v793
  %v1032 = vadd.f32 %v788, %v1031
  %v1033 = vmul.f32 %v752, %v799
  %v1034 = vadd.f32 %v1032, %v1033
  %1036 = vset.pattern.permute.xlu0 6
  %1037 = vperm.xlu0 %1036, %v1030
  %v1038 = vpop.permute.xlu0 %1037
  %v1040 = vmul.f32 %v1038, %v805
  %v1041 = vadd.f32 %v1034, %v1040
  %1042 = vset.pattern.permute.xlu0 7
  %1043 = vperm.xlu0 %1042, %v1030
  %v1044 = vpop.permute.xlu0 %1043
  %v1046 = vmul.f32 %v1044, %v811
  %v1047 = vadd.f32 %v1041, %v1046
  %v1048 = vmul.f32 %v1047, %v22
  %v1049 = vtanh.pop %v1048
  %v1050 = vadd.f32 %v1049, 1.0
  %v1051 = vmul.f32 %v1050, 0.5
  %v1052 = vsel %vm21, %v1049, %v1051
  %v1053 = vmul.f32 %v1052, %v1024
  %1055 = vrot.lane.b32.xlu0 %v1052, 124
  %v1056 = vpop.permute.xlu0 %1055
  %v1058 = vmul.f32 %v1052, %v1056
  %1060 = vrot.lane.b32.xlu0 %v1058, 2
  %v1061 = vpop.permute.xlu0 %1060
  %v1063 = vadd.f32 %v1053, %v1061
  %v1064 = vtanh.pop %v1063
  %1066 = vrot.lane.b32.xlu0 %v1064, 4
  %v1067 = vpop.permute.xlu0 %1066
  %v1069 = vmul.f32 %v1052, %v1067
  %1071 = vset.pattern.permute.xlu0 6
  %1072 = vperm.xlu0 %1071, %v777
  %v1073 = vpop.permute.xlu0 %1072
  %v1075 = vmul.f32 %v1073, %v793
  %v1076 = vadd.f32 %v788, %v1075
  %1077 = vset.pattern.permute.xlu0 7
  %1078 = vperm.xlu0 %1077, %v777
  %v1079 = vpop.permute.xlu0 %1078
  %v1081 = vmul.f32 %v1079, %v799
  %v1082 = vadd.f32 %v1076, %v1081
  %1084 = vset.pattern.permute.xlu0 6
  %1085 = vperm.xlu0 %1084, %v1069
  %v1086 = vpop.permute.xlu0 %1085
  %v1088 = vmul.f32 %v1086, %v805
  %v1089 = vadd.f32 %v1082, %v1088
  %1090 = vset.pattern.permute.xlu0 7
  %1091 = vperm.xlu0 %1090, %v1069
  %v1092 = vpop.permute.xlu0 %1091
  %v1094 = vmul.f32 %v1092, %v811
  %v1095 = vadd.f32 %v1089, %v1094
  %v1096 = vmul.f32 %v1095, %v22
  %v1097 = vtanh.pop %v1096
  %v1098 = vadd.f32 %v1097, 1.0
  %v1099 = vmul.f32 %v1098, 0.5
  %v1100 = vsel %vm21, %v1097, %v1099
  %v1101 = vmul.f32 %v1100, %v1063
  %1103 = vrot.lane.b32.xlu0 %v1100, 124
  %v1104 = vpop.permute.xlu0 %1103
  %v1106 = vmul.f32 %v1100, %v1104
  %1108 = vrot.lane.b32.xlu0 %v1106, 2
  %v1109 = vpop.permute.xlu0 %1108
  %v1111 = vadd.f32 %v1101, %v1109
  %v1112 = vtanh.pop %v1111
  %1114 = vrot.lane.b32.xlu0 %v1112, 4
  %v1115 = vpop.permute.xlu0 %1114
  %v1117 = vmul.f32 %v1100, %v1115
  %1119 = vrot.lane.b32.xlu0 %v835, 122
  %v1120 = vpop.permute.xlu0 %1119
  %1121 = vrot.lane.b32.xlu0 %v874, 122
  %v1122 = vpop.permute.xlu0 %1121
  %1123 = vrot.lane.b32.xlu0 %v913, 122
  %v1124 = vpop.permute.xlu0 %1123
  %1125 = vrot.lane.b32.xlu0 %v952, 122
  %v1126 = vpop.permute.xlu0 %1125
  %1127 = vrot.lane.b32.xlu0 %v991, 122
  %v1128 = vpop.permute.xlu0 %1127
  %1129 = vrot.lane.b32.xlu0 %v1030, 122
  %v1130 = vpop.permute.xlu0 %1129
  %1131 = vrot.lane.b32.xlu0 %v1069, 122
  %v1132 = vpop.permute.xlu0 %1131
  %1133 = vrot.lane.b32.xlu0 %v1117, 122
  %v1134 = vpop.permute.xlu0 %1133
  %vm1143 = vcmask 9216
  %1144 = vst.msk [vmem:[%s4] sm:$0x3] %vm1143, %v1120
  %1145 = vst.msk [vmem:[%s4 + $0x2] sm:$0x3] %vm1143, %v1122
  %1146 = vst.msk [vmem:[%s4 + $0x4] sm:$0x3] %vm1143, %v1124
  %1147 = vst.msk [vmem:[%s4 + $0x6] sm:$0x3] %vm1143, %v1126
  %1148 = vst.msk [vmem:[%s4 + $0x8] sm:$0x3] %vm1143, %v1128
  %1149 = vst.msk [vmem:[%s4 + $0xa] sm:$0x3] %vm1143, %v1130
  %1150 = vst.msk [vmem:[%s4 + $0xc] sm:$0x3] %vm1143, %v1132
  %1151 = vst.msk [vmem:[%s4 + $0xe] sm:$0x3] %vm1143, %v1134
  // Predicated region
  $region18: #{tpu_custom_call.1} parent=0 // pred_check
    _
  $region19: #{tpu_custom_call.1} parent=0 // pred_check_branch
    %1153 = sbr.rel (0) target = $region21
  $region20: #{tpu_custom_call.1} parent=0 // pred_region
    _
  $region21: #{tpu_custom_call.1} parent=0 // pred_fallthru
    _
  // Predicated region
  $region22: #{tpu_custom_call.1} parent=0 // pred_check
    _
  $region23: #{tpu_custom_call.1} parent=0 // pred_check_branch
    %1155 = sbr.rel (0) target = $region25
  $region24: #{tpu_custom_call.1} parent=0 // pred_region
    _
  $region25: #{tpu_custom_call.1} parent=0 // pred_fallthru
    _

</llo_original>
